<compile_context>
chip_gen: v5e
topology: v5e:2x2
jax: 0.10.0
libtpu: 0.0.40
codegen_flags: <defaults>
</compile_context>

<pallas_src>
import jax
import jax.numpy as jnp
from jax.experimental import pallas as pl
from jax.experimental.pallas import tpu as pltpu

# ---------------- model hyper-params (consistent with the module) -----------
N_OUT = 100          # `N` in the reference script (fc output / conv length)
N_PAD = 128          # lane-padded output width
HIDDEN = 32          # hidden_size
NUM_LAYERS = 2       # num_layers (hard-wired to 2 in the kernel unroll)
INPUT_SIZE = 1       # 2-D input path -> unsqueeze(-1)
BATCH = 8
SEQ = 8

assert 4 * HIDDEN == N_PAD  # lets us pack biases / wih0 / bfc into one (4, 128) slab


def generator_kernel(x_ref, small_ref, wcomb_ref, whh1T_ref, wfcT_ref, out_ref):
    """Whole forward pass for one (small) batch, everything resident in VMEM."""
    x = x_ref[...]                       # (B, T)  float32, input_size == 1
    B, T = x.shape
    H = HIDDEN
    H4 = 4 * H

    # bf16 weight slabs (MXU operands); accumulation stays f32 via preferred_element_type.
    wcomb = wcomb_ref[...]               # (H, 8H)  [W_ih_l1^T | W_hh_l0^T]
    whh1T = whh1T_ref[...]               # (H, 4H)  layer-1 recurrent weights^T
    wfcT = wfcT_ref[...]                 # (H, N_PAD), conv1∘conv2 affine pre-folded
    wih1T = wcomb[:, :H4]                # static lane-aligned slice (last step only)

    small = small_ref[...]               # (4, 128) f32: [wih0_row, b0, b1, bfc_pad]
    # Hoist all broadcasts out of the unrolled loop (JAX does not CSE broadcast_in_dim).
    wih0 = jnp.broadcast_to(small[0:1, :], (B, H4))   # layer-0 input weights (input_size==1)
    b0 = jnp.broadcast_to(small[1:2, :], (B, H4))
    b1 = jnp.broadcast_to(small[2:3, :], (B, H4))
    bfc = small[3:4, :]                               # (1, N_PAD)

    def gates_to_hc(gates, c):
        # PyTorch gate order: i, f, g, o.  Apply sigmoid/tanh to the full
        # (B, 4H) = (B, 128) f32 vreg (2 EUP pushes) and slice afterwards.
        # Gate / cell math stays f32 (v5e has no bf16 VPU/EUP).
        s = jax.nn.sigmoid(gates)
        t_ = jnp.tanh(gates)
        i = s[:, 0 * H:1 * H]
        f = s[:, 1 * H:2 * H]
        g = t_[:, 2 * H:3 * H]
        o = s[:, 3 * H:4 * H]
        c_new = f * c + i * g
        h_new = o * jnp.tanh(c_new)
        return h_new, c_new

    # Layer-0 input pre-activations for all T, hoisted before the recurrence
    # (recurrence-independent -> overlaps with step-0 MXU latency).
    xw = [x[:, t:t + 1] * wih0 + b0 for t in range(T)]   # T x (B, 4H), f32, VPU only

    z = jnp.zeros((B, H), jnp.float32)
    h2, c1, c2 = z, z, z
    # Layer-0 recurrent pre-activation h1_prev @ Whh0^T; zero at t=0 (h1_0 == 0).
    rec0 = jnp.zeros((B, H4), jnp.float32)

    # Static unroll of the recurrence (T is a compile-time constant): all slices are
    # static and the LLO scheduler can overlap MXU/EUP/VPU work across steps.
    for t in range(T):
        # ---- layer 0: no MXU work on the critical path (rec0 came from the fused
        #      dot of the previous step), just VPU gate math.
        g1 = xw[t] + rec0
        h1, c1 = gates_to_hc(g1, c1)
        h1b = h1.astype(jnp.bfloat16)

        # TODO(synk): inter-layer dropout (p=0.2) skipped — eval()/inference semantics.

        # Off-critical-path dot: depends only on h2 from the previous step, so the
        # scheduler can issue it early and overlap it with layer-0 gate math.
        rec1 = jnp.dot(h2.astype(jnp.bfloat16), whh1T,
                       preferred_element_type=jnp.float32)           # (B, 4H)

        if t + 1 < T:
            # ONE fused (B,H)x(H,8H) dot on the serial chain: first 4H lanes are
            # layer-1's input contribution now, last 4H lanes are layer-0's
            # recurrent pre-activation for step t+1.
            fused = jnp.dot(h1b, wcomb, preferred_element_type=jnp.float32)  # (B, 8H)
            ih1 = fused[:, :H4]
            rec0 = fused[:, H4:]
        else:
            # Last step: the whh0T half would be unused -> skip it.
            ih1 = jnp.dot(h1b, wih1T, preferred_element_type=jnp.float32)

        # Single accumulated expression (MRB in-place accumulate friendly on v7x).
        g2 = ih1 + rec1 + b1
        h2, c2 = gates_to_hc(g2, c2)

    # fc(out[:, -1, :]) with the k=1 conv1∘conv2 affine already folded into wfcT/bfc.
    # Output is lane-padded to 128 -> full unmasked store.
    y = jnp.dot(h2.astype(jnp.bfloat16), wfcT,
                preferred_element_type=jnp.float32) + bfc
    out_ref[...] = y.astype(out_ref.dtype)


# ---------------- parameter construction / packing --------------------------
def init_raw_params(key):
    """Deterministic synthetic parameters with PyTorch-native shapes."""
    ks = jax.random.split(key, 14)
    kH = float(1.0 / HIDDEN ** 0.5)

    def u(k, shape, scale):
        return jax.random.uniform(k, shape, jnp.float32, -scale, scale)

    return dict(
        # LSTM layer 0
        w_ih0=u(ks[0], (4 * HIDDEN, INPUT_SIZE), kH),
        w_hh0=u(ks[1], (4 * HIDDEN, HIDDEN), kH),
        b_ih0=u(ks[2], (4 * HIDDEN,), kH),
        b_hh0=u(ks[3], (4 * HIDDEN,), kH),
        # LSTM layer 1
        w_ih1=u(ks[4], (4 * HIDDEN, HIDDEN), kH),
        w_hh1=u(ks[5], (4 * HIDDEN, HIDDEN), kH),
        b_ih1=u(ks[6], (4 * HIDDEN,), kH),
        b_hh1=u(ks[7], (4 * HIDDEN,), kH),
        # fc: Linear(HIDDEN, N)
        fc_w=u(ks[8], (N_OUT, HIDDEN), kH),
        fc_b=u(ks[9], (N_OUT,), kH),
        # conv1: Conv1d(1, 4, 1) ; conv2: Conv1d(4, 1, 1)
        conv1_w=u(ks[10], (4, 1, 1), 1.0),
        conv1_b=u(ks[11], (4,), 1.0),
        conv2_w=u(ks[12], (1, 4, 1), 0.5),
        conv2_b=u(ks[13], (1,), 0.5),
    )


def pack_params(raw):
    """Fold the k=1 convs into the FC, fuse weights, and pack lane-dense slabs."""
    H = HIDDEN
    # conv1 then conv2 (both k=1, pointwise-linear) == exact scalar affine y*scale + bias.
    w1 = raw["conv1_w"].reshape(4)
    w2 = raw["conv2_w"].reshape(4)
    scale = jnp.sum(w1 * w2)
    bias = jnp.dot(raw["conv1_b"], w2) + raw["conv2_b"].reshape(())

    wfcT = raw["fc_w"].T * scale                             # (H, N)
    bfc = raw["fc_b"] * scale + bias                         # (N,)
    wfcT_pad = jnp.zeros((H, N_PAD), jnp.float32).at[:, :N_OUT].set(wfcT)
    bfc_pad = jnp.zeros((N_PAD,), jnp.float32).at[:N_OUT].set(bfc)

    b0 = raw["b_ih0"] + raw["b_hh0"]                         # (4H,)
    b1 = raw["b_ih1"] + raw["b_hh1"]                         # (4H,)
    wih0 = raw["w_ih0"].reshape(4 * H)                       # input_size == 1 -> one row
    small = jnp.stack([wih0, b0, b1, bfc_pad], axis=0)       # (4, 128) f32 (VPU operands)

    # Fused slab: one (H, 8H) dot per step covers W_ih_l1^T (layer-1 input
    # contribution) and W_hh_l0^T (next step's layer-0 recurrent pre-activation).
    wcomb = jnp.concatenate([raw["w_ih1"].T, raw["w_hh0"].T], axis=1)   # (H, 8H)

    # MXU operands in bf16 (matches default-precision f32-dot numerics, halves
    # weight bytes / live weight vregs across the T=8 unroll).
    return dict(
        small=small,
        wcomb=wcomb.astype(jnp.bfloat16),
        whh1T=raw["w_hh1"].T.astype(jnp.bfloat16),
        wfcT_pad=wfcT_pad.astype(jnp.bfloat16),
    )


# ---------------- wrapper ----------------------------------------------------
def generator_forward(x, params):
    # x.float() and (for 2-D input) the implicit unsqueeze(-1) are handled by the
    # (B, T) layout with input_size == 1.
    x = x.astype(jnp.float32)
    B = x.shape[0]
    args = (x, params["small"], params["wcomb"], params["whh1T"], params["wfcT_pad"])
    out_pad = pl.pallas_call(
        generator_kernel,
        out_shape=jax.ShapeDtypeStruct((B, N_PAD), jnp.float32),
        in_specs=[pl.BlockSpec(memory_space=pltpu.MemorySpace.VMEM)] * len(args),
        out_specs=pl.BlockSpec(memory_space=pltpu.MemorySpace.VMEM),
    )(*args)
    # NOTE: at realistic batch sizes (e.g. the module's batch_size=128+), add
    #   grid=(pl.cdiv(B, batch_tile),) over the batch with
    #   dimension_semantics=("parallel",), constant index_maps (lambda i: (0, 0))
    #   for the weight slabs so they stay VMEM-resident, and batch tiles of
    #   256-512 rows to engage v7x's second TensorCore and fill the MXU M dim.
    return out_pad[:, :N_OUT]


# ---------------- pure-JAX reference (PyTorch eval() semantics) --------------
def generator_reference(x, raw):
    x = x.astype(jnp.float32)
    B, T = x.shape
    H = HIDDEN
    hp = jax.lax.Precision.HIGHEST
    h = [jnp.zeros((B, H), jnp.float32) for _ in range(NUM_LAYERS)]
    c = [jnp.zeros((B, H), jnp.float32) for _ in range(NUM_LAYERS)]
    w_ih = [raw["w_ih0"], raw["w_ih1"]]
    w_hh = [raw["w_hh0"], raw["w_hh1"]]
    b = [raw["b_ih0"] + raw["b_hh0"], raw["b_ih1"] + raw["b_hh1"]]
    for t in range(T):
        inp = x[:, t:t + 1]                                  # (B, 1): input_size == 1
        for l in range(NUM_LAYERS):
            gates = (jnp.dot(inp, w_ih[l].T, precision=hp)
                     + jnp.dot(h[l], w_hh[l].T, precision=hp) + b[l])
            i = jax.nn.sigmoid(gates[:, 0 * H:1 * H])
            f = jax.nn.sigmoid(gates[:, 1 * H:2 * H])
            g = jnp.tanh(gates[:, 2 * H:3 * H])
            o = jax.nn.sigmoid(gates[:, 3 * H:4 * H])
            c[l] = f * c[l] + i * g
            h[l] = o * jnp.tanh(c[l])
            inp = h[l]
    y = jnp.dot(h[-1], raw["fc_w"].T, precision=hp) + raw["fc_b"]      # (B, N)
    w1 = raw["conv1_w"].reshape(4)
    w2 = raw["conv2_w"].reshape(4)
    first = y[:, None, :] * w1[None, :, None] + raw["conv1_b"][None, :, None]
    return jnp.sum(first * w2[None, :, None], axis=1) + raw["conv2_b"].reshape(())


if __name__ == "__main__":
    key = jax.random.PRNGKey(0)
    k_x, k_p = jax.random.split(key)
    x = jax.random.normal(k_x, (BATCH, SEQ), jnp.float32)    # 2-D input path of the module
    raw = init_raw_params(k_p)
    params = pack_params(raw)

    out = generator_forward(x, params)
    out = jax.block_until_ready(out)
    assert out.shape == (BATCH, N_OUT)
    assert bool(jnp.all(jnp.isfinite(out)))

    ref = jax.block_until_ready(generator_reference(x, raw))
    max_err = float(jnp.max(jnp.abs(out - ref)))
    assert max_err < 2e-2, f"kernel mismatch vs reference, max abs err = {max_err}"

    print("KERNEL_OK")
</pallas_src>

<mosaic_0001>
module attributes {stable_mosaic.version = 11 : i64} {
  func.func @generator_kernel(%arg0: memref<8x8xf32, #tpu.memory_space<vmem>>, %arg1: memref<4x128xf32, #tpu.memory_space<vmem>>, %arg2: memref<32x256xbf16, #tpu.memory_space<vmem>>, %arg3: memref<32x128xbf16, #tpu.memory_space<vmem>>, %arg4: memref<32x128xbf16, #tpu.memory_space<vmem>>, %arg5: memref<8x128xf32, #tpu.memory_space<vmem>>) attributes {dimension_semantics = [], scalar_prefetch = 0 : i64, scratch_operands = 0 : i64, tpu.core_type = #tpu.core_type<tc>} {
    %c0 = arith.constant 0 : index
    %c0_0 = arith.constant 0 : index
    %0 = vector.load %arg0[%c0, %c0_0] : memref<8x8xf32, #tpu.memory_space<vmem>>, vector<8x8xf32>
    %c0_1 = arith.constant 0 : index
    %c0_2 = arith.constant 0 : index
    %1 = vector.load %arg2[%c0_1, %c0_2] : memref<32x256xbf16, #tpu.memory_space<vmem>>, vector<32x256xbf16>
    %c0_3 = arith.constant 0 : index
    %c0_4 = arith.constant 0 : index
    %2 = vector.load %arg3[%c0_3, %c0_4] : memref<32x128xbf16, #tpu.memory_space<vmem>>, vector<32x128xbf16>
    %c0_5 = arith.constant 0 : index
    %c0_6 = arith.constant 0 : index
    %3 = vector.load %arg4[%c0_5, %c0_6] : memref<32x128xbf16, #tpu.memory_space<vmem>>, vector<32x128xbf16>
    %4 = vector.extract_strided_slice %1 {offsets = [0, 0], sizes = [32, 128], strides = [1, 1]} : vector<32x256xbf16> to vector<32x128xbf16>
    %c0_7 = arith.constant 0 : index
    %c0_8 = arith.constant 0 : index
    %5 = vector.load %arg1[%c0_7, %c0_8] : memref<4x128xf32, #tpu.memory_space<vmem>>, vector<4x128xf32>
    %6 = vector.extract_strided_slice %5 {offsets = [0, 0], sizes = [1, 128], strides = [1, 1]} : vector<4x128xf32> to vector<1x128xf32>
    %7 = vector.shape_cast %6 : vector<1x128xf32> to vector<1x128xf32>
    %8 = vector.broadcast %7 : vector<1x128xf32> to vector<8x128xf32>
    %9 = vector.extract_strided_slice %5 {offsets = [1, 0], sizes = [1, 128], strides = [1, 1]} : vector<4x128xf32> to vector<1x128xf32>
    %10 = vector.shape_cast %9 : vector<1x128xf32> to vector<1x128xf32>
    %11 = vector.broadcast %10 : vector<1x128xf32> to vector<8x128xf32>
    %12 = vector.extract_strided_slice %5 {offsets = [2, 0], sizes = [1, 128], strides = [1, 1]} : vector<4x128xf32> to vector<1x128xf32>
    %13 = vector.shape_cast %12 : vector<1x128xf32> to vector<1x128xf32>
    %14 = vector.broadcast %13 : vector<1x128xf32> to vector<8x128xf32>
    %15 = vector.extract_strided_slice %5 {offsets = [3, 0], sizes = [1, 128], strides = [1, 1]} : vector<4x128xf32> to vector<1x128xf32>
    %16 = vector.extract_strided_slice %0 {offsets = [0, 0], sizes = [8, 1], strides = [1, 1]} : vector<8x8xf32> to vector<8x1xf32>
    %17 = vector.broadcast %16 : vector<8x1xf32> to vector<8x128xf32>
    %18 = arith.mulf %17, %8 : vector<8x128xf32>
    %19 = arith.addf %18, %11 : vector<8x128xf32>
    %20 = vector.extract_strided_slice %0 {offsets = [0, 1], sizes = [8, 1], strides = [1, 1]} : vector<8x8xf32> to vector<8x1xf32>
    %21 = vector.broadcast %20 : vector<8x1xf32> to vector<8x128xf32>
    %22 = arith.mulf %21, %8 : vector<8x128xf32>
    %23 = arith.addf %22, %11 : vector<8x128xf32>
    %24 = vector.extract_strided_slice %0 {offsets = [0, 2], sizes = [8, 1], strides = [1, 1]} : vector<8x8xf32> to vector<8x1xf32>
    %25 = vector.broadcast %24 : vector<8x1xf32> to vector<8x128xf32>
    %26 = arith.mulf %25, %8 : vector<8x128xf32>
    %27 = arith.addf %26, %11 : vector<8x128xf32>
    %28 = vector.extract_strided_slice %0 {offsets = [0, 3], sizes = [8, 1], strides = [1, 1]} : vector<8x8xf32> to vector<8x1xf32>
    %29 = vector.broadcast %28 : vector<8x1xf32> to vector<8x128xf32>
    %30 = arith.mulf %29, %8 : vector<8x128xf32>
    %31 = arith.addf %30, %11 : vector<8x128xf32>
    %32 = vector.extract_strided_slice %0 {offsets = [0, 4], sizes = [8, 1], strides = [1, 1]} : vector<8x8xf32> to vector<8x1xf32>
    %33 = vector.broadcast %32 : vector<8x1xf32> to vector<8x128xf32>
    %34 = arith.mulf %33, %8 : vector<8x128xf32>
    %35 = arith.addf %34, %11 : vector<8x128xf32>
    %36 = vector.extract_strided_slice %0 {offsets = [0, 5], sizes = [8, 1], strides = [1, 1]} : vector<8x8xf32> to vector<8x1xf32>
    %37 = vector.broadcast %36 : vector<8x1xf32> to vector<8x128xf32>
    %38 = arith.mulf %37, %8 : vector<8x128xf32>
    %39 = arith.addf %38, %11 : vector<8x128xf32>
    %40 = vector.extract_strided_slice %0 {offsets = [0, 6], sizes = [8, 1], strides = [1, 1]} : vector<8x8xf32> to vector<8x1xf32>
    %41 = vector.broadcast %40 : vector<8x1xf32> to vector<8x128xf32>
    %42 = arith.mulf %41, %8 : vector<8x128xf32>
    %43 = arith.addf %42, %11 : vector<8x128xf32>
    %44 = vector.extract_strided_slice %0 {offsets = [0, 7], sizes = [8, 1], strides = [1, 1]} : vector<8x8xf32> to vector<8x1xf32>
    %45 = vector.broadcast %44 : vector<8x1xf32> to vector<8x128xf32>
    %46 = arith.mulf %45, %8 : vector<8x128xf32>
    %47 = arith.addf %46, %11 : vector<8x128xf32>
    %cst = arith.constant 0.000000e+00 : f32
    %48 = vector.broadcast %cst : f32 to vector<8x32xf32>
    %cst_9 = arith.constant 0.000000e+00 : f32
    %49 = vector.broadcast %cst_9 : f32 to vector<8x128xf32>
    %50 = arith.addf %19, %49 : vector<8x128xf32>
    %51 = arith.negf %50 : vector<8x128xf32>
    %52 = math.exp %51 : vector<8x128xf32>
    %cst_10 = arith.constant 1.000000e+00 : f32
    %53 = vector.broadcast %cst_10 : f32 to vector<8x128xf32>
    %54 = arith.addf %53, %52 : vector<8x128xf32>
    %55 = arith.divf %53, %54 : vector<8x128xf32>
    %56 = math.tanh %50 : vector<8x128xf32>
    %57 = vector.extract_strided_slice %55 {offsets = [0, 0], sizes = [8, 32], strides = [1, 1]} : vector<8x128xf32> to vector<8x32xf32>
    %58 = vector.extract_strided_slice %55 {offsets = [0, 32], sizes = [8, 32], strides = [1, 1]} : vector<8x128xf32> to vector<8x32xf32>
    %59 = vector.extract_strided_slice %56 {offsets = [0, 64], sizes = [8, 32], strides = [1, 1]} : vector<8x128xf32> to vector<8x32xf32>
    %60 = vector.extract_strided_slice %55 {offsets = [0, 96], sizes = [8, 32], strides = [1, 1]} : vector<8x128xf32> to vector<8x32xf32>
    %61 = arith.mulf %58, %48 : vector<8x32xf32>
    %62 = arith.mulf %57, %59 : vector<8x32xf32>
    %63 = arith.addf %61, %62 : vector<8x32xf32>
    %64 = math.tanh %63 : vector<8x32xf32>
    %65 = arith.mulf %60, %64 : vector<8x32xf32>
    %66 = arith.truncf %65 : vector<8x32xf32> to vector<8x32xbf16>
    %67 = arith.truncf %48 : vector<8x32xf32> to vector<8x32xbf16>
    %cst_11 = arith.constant dense<0.000000e+00> : vector<8x128xf32>
    %68 = tpu.matmul %67, %2, %cst_11 {dimension_numbers = #tpu.dot_dimension_numbers<[1], [0], [0], [1], [0, 0, 1, 1], [], []>} : vector<8x32xbf16>, vector<32x128xbf16>, vector<8x128xf32> -> vector<8x128xf32>
    %cst_12 = arith.constant dense<0.000000e+00> : vector<8x256xf32>
    %69 = tpu.matmul %66, %1, %cst_12 {dimension_numbers = #tpu.dot_dimension_numbers<[1], [0], [0], [1], [0, 0, 1, 1], [], []>} : vector<8x32xbf16>, vector<32x256xbf16>, vector<8x256xf32> -> vector<8x256xf32>
    %70 = vector.extract_strided_slice %69 {offsets = [0, 0], sizes = [8, 128], strides = [1, 1]} : vector<8x256xf32> to vector<8x128xf32>
    %71 = vector.extract_strided_slice %69 {offsets = [0, 128], sizes = [8, 128], strides = [1, 1]} : vector<8x256xf32> to vector<8x128xf32>
    %72 = arith.addf %70, %68 : vector<8x128xf32>
    %73 = arith.addf %72, %14 : vector<8x128xf32>
    %74 = arith.negf %73 : vector<8x128xf32>
    %75 = math.exp %74 : vector<8x128xf32>
    %cst_13 = arith.constant 1.000000e+00 : f32
    %76 = vector.broadcast %cst_13 : f32 to vector<8x128xf32>
    %77 = arith.addf %76, %75 : vector<8x128xf32>
    %78 = arith.divf %76, %77 : vector<8x128xf32>
    %79 = math.tanh %73 : vector<8x128xf32>
    %80 = vector.extract_strided_slice %78 {offsets = [0, 0], sizes = [8, 32], strides = [1, 1]} : vector<8x128xf32> to vector<8x32xf32>
    %81 = vector.extract_strided_slice %78 {offsets = [0, 32], sizes = [8, 32], strides = [1, 1]} : vector<8x128xf32> to vector<8x32xf32>
    %82 = vector.extract_strided_slice %79 {offsets = [0, 64], sizes = [8, 32], strides = [1, 1]} : vector<8x128xf32> to vector<8x32xf32>
    %83 = vector.extract_strided_slice %78 {offsets = [0, 96], sizes = [8, 32], strides = [1, 1]} : vector<8x128xf32> to vector<8x32xf32>
    %84 = arith.mulf %81, %48 : vector<8x32xf32>
    %85 = arith.mulf %80, %82 : vector<8x32xf32>
    %86 = arith.addf %84, %85 : vector<8x32xf32>
    %87 = math.tanh %86 : vector<8x32xf32>
    %88 = arith.mulf %83, %87 : vector<8x32xf32>
    %89 = arith.addf %23, %71 : vector<8x128xf32>
    %90 = arith.negf %89 : vector<8x128xf32>
    %91 = math.exp %90 : vector<8x128xf32>
    %cst_14 = arith.constant 1.000000e+00 : f32
    %92 = vector.broadcast %cst_14 : f32 to vector<8x128xf32>
    %93 = arith.addf %92, %91 : vector<8x128xf32>
    %94 = arith.divf %92, %93 : vector<8x128xf32>
    %95 = math.tanh %89 : vector<8x128xf32>
    %96 = vector.extract_strided_slice %94 {offsets = [0, 0], sizes = [8, 32], strides = [1, 1]} : vector<8x128xf32> to vector<8x32xf32>
    %97 = vector.extract_strided_slice %94 {offsets = [0, 32], sizes = [8, 32], strides = [1, 1]} : vector<8x128xf32> to vector<8x32xf32>
    %98 = vector.extract_strided_slice %95 {offsets = [0, 64], sizes = [8, 32], strides = [1, 1]} : vector<8x128xf32> to vector<8x32xf32>
    %99 = vector.extract_strided_slice %94 {offsets = [0, 96], sizes = [8, 32], strides = [1, 1]} : vector<8x128xf32> to vector<8x32xf32>
    %100 = arith.mulf %97, %63 : vector<8x32xf32>
    %101 = arith.mulf %96, %98 : vector<8x32xf32>
    %102 = arith.addf %100, %101 : vector<8x32xf32>
    %103 = math.tanh %102 : vector<8x32xf32>
    %104 = arith.mulf %99, %103 : vector<8x32xf32>
    %105 = arith.truncf %104 : vector<8x32xf32> to vector<8x32xbf16>
    %106 = arith.truncf %88 : vector<8x32xf32> to vector<8x32xbf16>
    %cst_15 = arith.constant dense<0.000000e+00> : vector<8x128xf32>
    %107 = tpu.matmul %106, %2, %cst_15 {dimension_numbers = #tpu.dot_dimension_numbers<[1], [0], [0], [1], [0, 0, 1, 1], [], []>} : vector<8x32xbf16>, vector<32x128xbf16>, vector<8x128xf32> -> vector<8x128xf32>
    %cst_16 = arith.constant dense<0.000000e+00> : vector<8x256xf32>
    %108 = tpu.matmul %105, %1, %cst_16 {dimension_numbers = #tpu.dot_dimension_numbers<[1], [0], [0], [1], [0, 0, 1, 1], [], []>} : vector<8x32xbf16>, vector<32x256xbf16>, vector<8x256xf32> -> vector<8x256xf32>
    %109 = vector.extract_strided_slice %108 {offsets = [0, 0], sizes = [8, 128], strides = [1, 1]} : vector<8x256xf32> to vector<8x128xf32>
    %110 = vector.extract_strided_slice %108 {offsets = [0, 128], sizes = [8, 128], strides = [1, 1]} : vector<8x256xf32> to vector<8x128xf32>
    %111 = arith.addf %109, %107 : vector<8x128xf32>
    %112 = arith.addf %111, %14 : vector<8x128xf32>
    %113 = arith.negf %112 : vector<8x128xf32>
    %114 = math.exp %113 : vector<8x128xf32>
    %cst_17 = arith.constant 1.000000e+00 : f32
    %115 = vector.broadcast %cst_17 : f32 to vector<8x128xf32>
    %116 = arith.addf %115, %114 : vector<8x128xf32>
    %117 = arith.divf %115, %116 : vector<8x128xf32>
    %118 = math.tanh %112 : vector<8x128xf32>
    %119 = vector.extract_strided_slice %117 {offsets = [0, 0], sizes = [8, 32], strides = [1, 1]} : vector<8x128xf32> to vector<8x32xf32>
    %120 = vector.extract_strided_slice %117 {offsets = [0, 32], sizes = [8, 32], strides = [1, 1]} : vector<8x128xf32> to vector<8x32xf32>
    %121 = vector.extract_strided_slice %118 {offsets = [0, 64], sizes = [8, 32], strides = [1, 1]} : vector<8x128xf32> to vector<8x32xf32>
    %122 = vector.extract_strided_slice %117 {offsets = [0, 96], sizes = [8, 32], strides = [1, 1]} : vector<8x128xf32> to vector<8x32xf32>
    %123 = arith.mulf %120, %86 : vector<8x32xf32>
    %124 = arith.mulf %119, %121 : vector<8x32xf32>
    %125 = arith.addf %123, %124 : vector<8x32xf32>
    %126 = math.tanh %125 : vector<8x32xf32>
    %127 = arith.mulf %122, %126 : vector<8x32xf32>
    %128 = arith.addf %27, %110 : vector<8x128xf32>
    %129 = arith.negf %128 : vector<8x128xf32>
    %130 = math.exp %129 : vector<8x128xf32>
    %cst_18 = arith.constant 1.000000e+00 : f32
    %131 = vector.broadcast %cst_18 : f32 to vector<8x128xf32>
    %132 = arith.addf %131, %130 : vector<8x128xf32>
    %133 = arith.divf %131, %132 : vector<8x128xf32>
    %134 = math.tanh %128 : vector<8x128xf32>
    %135 = vector.extract_strided_slice %133 {offsets = [0, 0], sizes = [8, 32], strides = [1, 1]} : vector<8x128xf32> to vector<8x32xf32>
    %136 = vector.extract_strided_slice %133 {offsets = [0, 32], sizes = [8, 32], strides = [1, 1]} : vector<8x128xf32> to vector<8x32xf32>
    %137 = vector.extract_strided_slice %134 {offsets = [0, 64], sizes = [8, 32], strides = [1, 1]} : vector<8x128xf32> to vector<8x32xf32>
    %138 = vector.extract_strided_slice %133 {offsets = [0, 96], sizes = [8, 32], strides = [1, 1]} : vector<8x128xf32> to vector<8x32xf32>
    %139 = arith.mulf %136, %102 : vector<8x32xf32>
    %140 = arith.mulf %135, %137 : vector<8x32xf32>
    %141 = arith.addf %139, %140 : vector<8x32xf32>
    %142 = math.tanh %141 : vector<8x32xf32>
    %143 = arith.mulf %138, %142 : vector<8x32xf32>
    %144 = arith.truncf %143 : vector<8x32xf32> to vector<8x32xbf16>
    %145 = arith.truncf %127 : vector<8x32xf32> to vector<8x32xbf16>
    %cst_19 = arith.constant dense<0.000000e+00> : vector<8x128xf32>
    %146 = tpu.matmul %145, %2, %cst_19 {dimension_numbers = #tpu.dot_dimension_numbers<[1], [0], [0], [1], [0, 0, 1, 1], [], []>} : vector<8x32xbf16>, vector<32x128xbf16>, vector<8x128xf32> -> vector<8x128xf32>
    %cst_20 = arith.constant dense<0.000000e+00> : vector<8x256xf32>
    %147 = tpu.matmul %144, %1, %cst_20 {dimension_numbers = #tpu.dot_dimension_numbers<[1], [0], [0], [1], [0, 0, 1, 1], [], []>} : vector<8x32xbf16>, vector<32x256xbf16>, vector<8x256xf32> -> vector<8x256xf32>
    %148 = vector.extract_strided_slice %147 {offsets = [0, 0], sizes = [8, 128], strides = [1, 1]} : vector<8x256xf32> to vector<8x128xf32>
    %149 = vector.extract_strided_slice %147 {offsets = [0, 128], sizes = [8, 128], strides = [1, 1]} : vector<8x256xf32> to vector<8x128xf32>
    %150 = arith.addf %148, %146 : vector<8x128xf32>
    %151 = arith.addf %150, %14 : vector<8x128xf32>
    %152 = arith.negf %151 : vector<8x128xf32>
    %153 = math.exp %152 : vector<8x128xf32>
    %cst_21 = arith.constant 1.000000e+00 : f32
    %154 = vector.broadcast %cst_21 : f32 to vector<8x128xf32>
    %155 = arith.addf %154, %153 : vector<8x128xf32>
    %156 = arith.divf %154, %155 : vector<8x128xf32>
    %157 = math.tanh %151 : vector<8x128xf32>
    %158 = vector.extract_strided_slice %156 {offsets = [0, 0], sizes = [8, 32], strides = [1, 1]} : vector<8x128xf32> to vector<8x32xf32>
    %159 = vector.extract_strided_slice %156 {offsets = [0, 32], sizes = [8, 32], strides = [1, 1]} : vector<8x128xf32> to vector<8x32xf32>
    %160 = vector.extract_strided_slice %157 {offsets = [0, 64], sizes = [8, 32], strides = [1, 1]} : vector<8x128xf32> to vector<8x32xf32>
    %161 = vector.extract_strided_slice %156 {offsets = [0, 96], sizes = [8, 32], strides = [1, 1]} : vector<8x128xf32> to vector<8x32xf32>
    %162 = arith.mulf %159, %125 : vector<8x32xf32>
    %163 = arith.mulf %158, %160 : vector<8x32xf32>
    %164 = arith.addf %162, %163 : vector<8x32xf32>
    %165 = math.tanh %164 : vector<8x32xf32>
    %166 = arith.mulf %161, %165 : vector<8x32xf32>
    %167 = arith.addf %31, %149 : vector<8x128xf32>
    %168 = arith.negf %167 : vector<8x128xf32>
    %169 = math.exp %168 : vector<8x128xf32>
    %cst_22 = arith.constant 1.000000e+00 : f32
    %170 = vector.broadcast %cst_22 : f32 to vector<8x128xf32>
    %171 = arith.addf %170, %169 : vector<8x128xf32>
    %172 = arith.divf %170, %171 : vector<8x128xf32>
    %173 = math.tanh %167 : vector<8x128xf32>
    %174 = vector.extract_strided_slice %172 {offsets = [0, 0], sizes = [8, 32], strides = [1, 1]} : vector<8x128xf32> to vector<8x32xf32>
    %175 = vector.extract_strided_slice %172 {offsets = [0, 32], sizes = [8, 32], strides = [1, 1]} : vector<8x128xf32> to vector<8x32xf32>
    %176 = vector.extract_strided_slice %173 {offsets = [0, 64], sizes = [8, 32], strides = [1, 1]} : vector<8x128xf32> to vector<8x32xf32>
    %177 = vector.extract_strided_slice %172 {offsets = [0, 96], sizes = [8, 32], strides = [1, 1]} : vector<8x128xf32> to vector<8x32xf32>
    %178 = arith.mulf %175, %141 : vector<8x32xf32>
    %179 = arith.mulf %174, %176 : vector<8x32xf32>
    %180 = arith.addf %178, %179 : vector<8x32xf32>
    %181 = math.tanh %180 : vector<8x32xf32>
    %182 = arith.mulf %177, %181 : vector<8x32xf32>
    %183 = arith.truncf %182 : vector<8x32xf32> to vector<8x32xbf16>
    %184 = arith.truncf %166 : vector<8x32xf32> to vector<8x32xbf16>
    %cst_23 = arith.constant dense<0.000000e+00> : vector<8x128xf32>
    %185 = tpu.matmul %184, %2, %cst_23 {dimension_numbers = #tpu.dot_dimension_numbers<[1], [0], [0], [1], [0, 0, 1, 1], [], []>} : vector<8x32xbf16>, vector<32x128xbf16>, vector<8x128xf32> -> vector<8x128xf32>
    %cst_24 = arith.constant dense<0.000000e+00> : vector<8x256xf32>
    %186 = tpu.matmul %183, %1, %cst_24 {dimension_numbers = #tpu.dot_dimension_numbers<[1], [0], [0], [1], [0, 0, 1, 1], [], []>} : vector<8x32xbf16>, vector<32x256xbf16>, vector<8x256xf32> -> vector<8x256xf32>
    %187 = vector.extract_strided_slice %186 {offsets = [0, 0], sizes = [8, 128], strides = [1, 1]} : vector<8x256xf32> to vector<8x128xf32>
    %188 = vector.extract_strided_slice %186 {offsets = [0, 128], sizes = [8, 128], strides = [1, 1]} : vector<8x256xf32> to vector<8x128xf32>
    %189 = arith.addf %187, %185 : vector<8x128xf32>
    %190 = arith.addf %189, %14 : vector<8x128xf32>
    %191 = arith.negf %190 : vector<8x128xf32>
    %192 = math.exp %191 : vector<8x128xf32>
    %cst_25 = arith.constant 1.000000e+00 : f32
    %193 = vector.broadcast %cst_25 : f32 to vector<8x128xf32>
    %194 = arith.addf %193, %192 : vector<8x128xf32>
    %195 = arith.divf %193, %194 : vector<8x128xf32>
    %196 = math.tanh %190 : vector<8x128xf32>
    %197 = vector.extract_strided_slice %195 {offsets = [0, 0], sizes = [8, 32], strides = [1, 1]} : vector<8x128xf32> to vector<8x32xf32>
    %198 = vector.extract_strided_slice %195 {offsets = [0, 32], sizes = [8, 32], strides = [1, 1]} : vector<8x128xf32> to vector<8x32xf32>
    %199 = vector.extract_strided_slice %196 {offsets = [0, 64], sizes = [8, 32], strides = [1, 1]} : vector<8x128xf32> to vector<8x32xf32>
    %200 = vector.extract_strided_slice %195 {offsets = [0, 96], sizes = [8, 32], strides = [1, 1]} : vector<8x128xf32> to vector<8x32xf32>
    %201 = arith.mulf %198, %164 : vector<8x32xf32>
    %202 = arith.mulf %197, %199 : vector<8x32xf32>
    %203 = arith.addf %201, %202 : vector<8x32xf32>
    %204 = math.tanh %203 : vector<8x32xf32>
    %205 = arith.mulf %200, %204 : vector<8x32xf32>
    %206 = arith.addf %35, %188 : vector<8x128xf32>
    %207 = arith.negf %206 : vector<8x128xf32>
    %208 = math.exp %207 : vector<8x128xf32>
    %cst_26 = arith.constant 1.000000e+00 : f32
    %209 = vector.broadcast %cst_26 : f32 to vector<8x128xf32>
    %210 = arith.addf %209, %208 : vector<8x128xf32>
    %211 = arith.divf %209, %210 : vector<8x128xf32>
    %212 = math.tanh %206 : vector<8x128xf32>
    %213 = vector.extract_strided_slice %211 {offsets = [0, 0], sizes = [8, 32], strides = [1, 1]} : vector<8x128xf32> to vector<8x32xf32>
    %214 = vector.extract_strided_slice %211 {offsets = [0, 32], sizes = [8, 32], strides = [1, 1]} : vector<8x128xf32> to vector<8x32xf32>
    %215 = vector.extract_strided_slice %212 {offsets = [0, 64], sizes = [8, 32], strides = [1, 1]} : vector<8x128xf32> to vector<8x32xf32>
    %216 = vector.extract_strided_slice %211 {offsets = [0, 96], sizes = [8, 32], strides = [1, 1]} : vector<8x128xf32> to vector<8x32xf32>
    %217 = arith.mulf %214, %180 : vector<8x32xf32>
    %218 = arith.mulf %213, %215 : vector<8x32xf32>
    %219 = arith.addf %217, %218 : vector<8x32xf32>
    %220 = math.tanh %219 : vector<8x32xf32>
    %221 = arith.mulf %216, %220 : vector<8x32xf32>
    %222 = arith.truncf %221 : vector<8x32xf32> to vector<8x32xbf16>
    %223 = arith.truncf %205 : vector<8x32xf32> to vector<8x32xbf16>
    %cst_27 = arith.constant dense<0.000000e+00> : vector<8x128xf32>
    %224 = tpu.matmul %223, %2, %cst_27 {dimension_numbers = #tpu.dot_dimension_numbers<[1], [0], [0], [1], [0, 0, 1, 1], [], []>} : vector<8x32xbf16>, vector<32x128xbf16>, vector<8x128xf32> -> vector<8x128xf32>
    %cst_28 = arith.constant dense<0.000000e+00> : vector<8x256xf32>
    %225 = tpu.matmul %222, %1, %cst_28 {dimension_numbers = #tpu.dot_dimension_numbers<[1], [0], [0], [1], [0, 0, 1, 1], [], []>} : vector<8x32xbf16>, vector<32x256xbf16>, vector<8x256xf32> -> vector<8x256xf32>
    %226 = vector.extract_strided_slice %225 {offsets = [0, 0], sizes = [8, 128], strides = [1, 1]} : vector<8x256xf32> to vector<8x128xf32>
    %227 = vector.extract_strided_slice %225 {offsets = [0, 128], sizes = [8, 128], strides = [1, 1]} : vector<8x256xf32> to vector<8x128xf32>
    %228 = arith.addf %226, %224 : vector<8x128xf32>
    %229 = arith.addf %228, %14 : vector<8x128xf32>
    %230 = arith.negf %229 : vector<8x128xf32>
    %231 = math.exp %230 : vector<8x128xf32>
    %cst_29 = arith.constant 1.000000e+00 : f32
    %232 = vector.broadcast %cst_29 : f32 to vector<8x128xf32>
    %233 = arith.addf %232, %231 : vector<8x128xf32>
    %234 = arith.divf %232, %233 : vector<8x128xf32>
    %235 = math.tanh %229 : vector<8x128xf32>
    %236 = vector.extract_strided_slice %234 {offsets = [0, 0], sizes = [8, 32], strides = [1, 1]} : vector<8x128xf32> to vector<8x32xf32>
    %237 = vector.extract_strided_slice %234 {offsets = [0, 32], sizes = [8, 32], strides = [1, 1]} : vector<8x128xf32> to vector<8x32xf32>
    %238 = vector.extract_strided_slice %235 {offsets = [0, 64], sizes = [8, 32], strides = [1, 1]} : vector<8x128xf32> to vector<8x32xf32>
    %239 = vector.extract_strided_slice %234 {offsets = [0, 96], sizes = [8, 32], strides = [1, 1]} : vector<8x128xf32> to vector<8x32xf32>
    %240 = arith.mulf %237, %203 : vector<8x32xf32>
    %241 = arith.mulf %236, %238 : vector<8x32xf32>
    %242 = arith.addf %240, %241 : vector<8x32xf32>
    %243 = math.tanh %242 : vector<8x32xf32>
    %244 = arith.mulf %239, %243 : vector<8x32xf32>
    %245 = arith.addf %39, %227 : vector<8x128xf32>
    %246 = arith.negf %245 : vector<8x128xf32>
    %247 = math.exp %246 : vector<8x128xf32>
    %cst_30 = arith.constant 1.000000e+00 : f32
    %248 = vector.broadcast %cst_30 : f32 to vector<8x128xf32>
    %249 = arith.addf %248, %247 : vector<8x128xf32>
    %250 = arith.divf %248, %249 : vector<8x128xf32>
    %251 = math.tanh %245 : vector<8x128xf32>
    %252 = vector.extract_strided_slice %250 {offsets = [0, 0], sizes = [8, 32], strides = [1, 1]} : vector<8x128xf32> to vector<8x32xf32>
    %253 = vector.extract_strided_slice %250 {offsets = [0, 32], sizes = [8, 32], strides = [1, 1]} : vector<8x128xf32> to vector<8x32xf32>
    %254 = vector.extract_strided_slice %251 {offsets = [0, 64], sizes = [8, 32], strides = [1, 1]} : vector<8x128xf32> to vector<8x32xf32>
    %255 = vector.extract_strided_slice %250 {offsets = [0, 96], sizes = [8, 32], strides = [1, 1]} : vector<8x128xf32> to vector<8x32xf32>
    %256 = arith.mulf %253, %219 : vector<8x32xf32>
    %257 = arith.mulf %252, %254 : vector<8x32xf32>
    %258 = arith.addf %256, %257 : vector<8x32xf32>
    %259 = math.tanh %258 : vector<8x32xf32>
    %260 = arith.mulf %255, %259 : vector<8x32xf32>
    %261 = arith.truncf %260 : vector<8x32xf32> to vector<8x32xbf16>
    %262 = arith.truncf %244 : vector<8x32xf32> to vector<8x32xbf16>
    %cst_31 = arith.constant dense<0.000000e+00> : vector<8x128xf32>
    %263 = tpu.matmul %262, %2, %cst_31 {dimension_numbers = #tpu.dot_dimension_numbers<[1], [0], [0], [1], [0, 0, 1, 1], [], []>} : vector<8x32xbf16>, vector<32x128xbf16>, vector<8x128xf32> -> vector<8x128xf32>
    %cst_32 = arith.constant dense<0.000000e+00> : vector<8x256xf32>
    %264 = tpu.matmul %261, %1, %cst_32 {dimension_numbers = #tpu.dot_dimension_numbers<[1], [0], [0], [1], [0, 0, 1, 1], [], []>} : vector<8x32xbf16>, vector<32x256xbf16>, vector<8x256xf32> -> vector<8x256xf32>
    %265 = vector.extract_strided_slice %264 {offsets = [0, 0], sizes = [8, 128], strides = [1, 1]} : vector<8x256xf32> to vector<8x128xf32>
    %266 = vector.extract_strided_slice %264 {offsets = [0, 128], sizes = [8, 128], strides = [1, 1]} : vector<8x256xf32> to vector<8x128xf32>
    %267 = arith.addf %265, %263 : vector<8x128xf32>
    %268 = arith.addf %267, %14 : vector<8x128xf32>
    %269 = arith.negf %268 : vector<8x128xf32>
    %270 = math.exp %269 : vector<8x128xf32>
    %cst_33 = arith.constant 1.000000e+00 : f32
    %271 = vector.broadcast %cst_33 : f32 to vector<8x128xf32>
    %272 = arith.addf %271, %270 : vector<8x128xf32>
    %273 = arith.divf %271, %272 : vector<8x128xf32>
    %274 = math.tanh %268 : vector<8x128xf32>
    %275 = vector.extract_strided_slice %273 {offsets = [0, 0], sizes = [8, 32], strides = [1, 1]} : vector<8x128xf32> to vector<8x32xf32>
    %276 = vector.extract_strided_slice %273 {offsets = [0, 32], sizes = [8, 32], strides = [1, 1]} : vector<8x128xf32> to vector<8x32xf32>
    %277 = vector.extract_strided_slice %274 {offsets = [0, 64], sizes = [8, 32], strides = [1, 1]} : vector<8x128xf32> to vector<8x32xf32>
    %278 = vector.extract_strided_slice %273 {offsets = [0, 96], sizes = [8, 32], strides = [1, 1]} : vector<8x128xf32> to vector<8x32xf32>
    %279 = arith.mulf %276, %242 : vector<8x32xf32>
    %280 = arith.mulf %275, %277 : vector<8x32xf32>
    %281 = arith.addf %279, %280 : vector<8x32xf32>
    %282 = math.tanh %281 : vector<8x32xf32>
    %283 = arith.mulf %278, %282 : vector<8x32xf32>
    %284 = arith.addf %43, %266 : vector<8x128xf32>
    %285 = arith.negf %284 : vector<8x128xf32>
    %286 = math.exp %285 : vector<8x128xf32>
    %cst_34 = arith.constant 1.000000e+00 : f32
    %287 = vector.broadcast %cst_34 : f32 to vector<8x128xf32>
    %288 = arith.addf %287, %286 : vector<8x128xf32>
    %289 = arith.divf %287, %288 : vector<8x128xf32>
    %290 = math.tanh %284 : vector<8x128xf32>
    %291 = vector.extract_strided_slice %289 {offsets = [0, 0], sizes = [8, 32], strides = [1, 1]} : vector<8x128xf32> to vector<8x32xf32>
    %292 = vector.extract_strided_slice %289 {offsets = [0, 32], sizes = [8, 32], strides = [1, 1]} : vector<8x128xf32> to vector<8x32xf32>
    %293 = vector.extract_strided_slice %290 {offsets = [0, 64], sizes = [8, 32], strides = [1, 1]} : vector<8x128xf32> to vector<8x32xf32>
    %294 = vector.extract_strided_slice %289 {offsets = [0, 96], sizes = [8, 32], strides = [1, 1]} : vector<8x128xf32> to vector<8x32xf32>
    %295 = arith.mulf %292, %258 : vector<8x32xf32>
    %296 = arith.mulf %291, %293 : vector<8x32xf32>
    %297 = arith.addf %295, %296 : vector<8x32xf32>
    %298 = math.tanh %297 : vector<8x32xf32>
    %299 = arith.mulf %294, %298 : vector<8x32xf32>
    %300 = arith.truncf %299 : vector<8x32xf32> to vector<8x32xbf16>
    %301 = arith.truncf %283 : vector<8x32xf32> to vector<8x32xbf16>
    %cst_35 = arith.constant dense<0.000000e+00> : vector<8x128xf32>
    %302 = tpu.matmul %301, %2, %cst_35 {dimension_numbers = #tpu.dot_dimension_numbers<[1], [0], [0], [1], [0, 0, 1, 1], [], []>} : vector<8x32xbf16>, vector<32x128xbf16>, vector<8x128xf32> -> vector<8x128xf32>
    %cst_36 = arith.constant dense<0.000000e+00> : vector<8x256xf32>
    %303 = tpu.matmul %300, %1, %cst_36 {dimension_numbers = #tpu.dot_dimension_numbers<[1], [0], [0], [1], [0, 0, 1, 1], [], []>} : vector<8x32xbf16>, vector<32x256xbf16>, vector<8x256xf32> -> vector<8x256xf32>
    %304 = vector.extract_strided_slice %303 {offsets = [0, 0], sizes = [8, 128], strides = [1, 1]} : vector<8x256xf32> to vector<8x128xf32>
    %305 = vector.extract_strided_slice %303 {offsets = [0, 128], sizes = [8, 128], strides = [1, 1]} : vector<8x256xf32> to vector<8x128xf32>
    %306 = arith.addf %304, %302 : vector<8x128xf32>
    %307 = arith.addf %306, %14 : vector<8x128xf32>
    %308 = arith.negf %307 : vector<8x128xf32>
    %309 = math.exp %308 : vector<8x128xf32>
    %cst_37 = arith.constant 1.000000e+00 : f32
    %310 = vector.broadcast %cst_37 : f32 to vector<8x128xf32>
    %311 = arith.addf %310, %309 : vector<8x128xf32>
    %312 = arith.divf %310, %311 : vector<8x128xf32>
    %313 = math.tanh %307 : vector<8x128xf32>
    %314 = vector.extract_strided_slice %312 {offsets = [0, 0], sizes = [8, 32], strides = [1, 1]} : vector<8x128xf32> to vector<8x32xf32>
    %315 = vector.extract_strided_slice %312 {offsets = [0, 32], sizes = [8, 32], strides = [1, 1]} : vector<8x128xf32> to vector<8x32xf32>
    %316 = vector.extract_strided_slice %313 {offsets = [0, 64], sizes = [8, 32], strides = [1, 1]} : vector<8x128xf32> to vector<8x32xf32>
    %317 = vector.extract_strided_slice %312 {offsets = [0, 96], sizes = [8, 32], strides = [1, 1]} : vector<8x128xf32> to vector<8x32xf32>
    %318 = arith.mulf %315, %281 : vector<8x32xf32>
    %319 = arith.mulf %314, %316 : vector<8x32xf32>
    %320 = arith.addf %318, %319 : vector<8x32xf32>
    %321 = math.tanh %320 : vector<8x32xf32>
    %322 = arith.mulf %317, %321 : vector<8x32xf32>
    %323 = arith.addf %47, %305 : vector<8x128xf32>
    %324 = arith.negf %323 : vector<8x128xf32>
    %325 = math.exp %324 : vector<8x128xf32>
    %cst_38 = arith.constant 1.000000e+00 : f32
    %326 = vector.broadcast %cst_38 : f32 to vector<8x128xf32>
    %327 = arith.addf %326, %325 : vector<8x128xf32>
    %328 = arith.divf %326, %327 : vector<8x128xf32>
    %329 = math.tanh %323 : vector<8x128xf32>
    %330 = vector.extract_strided_slice %328 {offsets = [0, 0], sizes = [8, 32], strides = [1, 1]} : vector<8x128xf32> to vector<8x32xf32>
    %331 = vector.extract_strided_slice %328 {offsets = [0, 32], sizes = [8, 32], strides = [1, 1]} : vector<8x128xf32> to vector<8x32xf32>
    %332 = vector.extract_strided_slice %329 {offsets = [0, 64], sizes = [8, 32], strides = [1, 1]} : vector<8x128xf32> to vector<8x32xf32>
    %333 = vector.extract_strided_slice %328 {offsets = [0, 96], sizes = [8, 32], strides = [1, 1]} : vector<8x128xf32> to vector<8x32xf32>
    %334 = arith.mulf %331, %297 : vector<8x32xf32>
    %335 = arith.mulf %330, %332 : vector<8x32xf32>
    %336 = arith.addf %334, %335 : vector<8x32xf32>
    %337 = math.tanh %336 : vector<8x32xf32>
    %338 = arith.mulf %333, %337 : vector<8x32xf32>
    %339 = arith.truncf %338 : vector<8x32xf32> to vector<8x32xbf16>
    %340 = arith.truncf %322 : vector<8x32xf32> to vector<8x32xbf16>
    %cst_39 = arith.constant dense<0.000000e+00> : vector<8x128xf32>
    %341 = tpu.matmul %340, %2, %cst_39 {dimension_numbers = #tpu.dot_dimension_numbers<[1], [0], [0], [1], [0, 0, 1, 1], [], []>} : vector<8x32xbf16>, vector<32x128xbf16>, vector<8x128xf32> -> vector<8x128xf32>
    %cst_40 = arith.constant dense<0.000000e+00> : vector<8x128xf32>
    %342 = tpu.matmul %339, %4, %cst_40 {dimension_numbers = #tpu.dot_dimension_numbers<[1], [0], [0], [1], [0, 0, 1, 1], [], []>} : vector<8x32xbf16>, vector<32x128xbf16>, vector<8x128xf32> -> vector<8x128xf32>
    %343 = arith.addf %342, %341 : vector<8x128xf32>
    %344 = arith.addf %343, %14 : vector<8x128xf32>
    %345 = arith.negf %344 : vector<8x128xf32>
    %346 = math.exp %345 : vector<8x128xf32>
    %cst_41 = arith.constant 1.000000e+00 : f32
    %347 = vector.broadcast %cst_41 : f32 to vector<8x128xf32>
    %348 = arith.addf %347, %346 : vector<8x128xf32>
    %349 = arith.divf %347, %348 : vector<8x128xf32>
    %350 = math.tanh %344 : vector<8x128xf32>
    %351 = vector.extract_strided_slice %349 {offsets = [0, 0], sizes = [8, 32], strides = [1, 1]} : vector<8x128xf32> to vector<8x32xf32>
    %352 = vector.extract_strided_slice %349 {offsets = [0, 32], sizes = [8, 32], strides = [1, 1]} : vector<8x128xf32> to vector<8x32xf32>
    %353 = vector.extract_strided_slice %350 {offsets = [0, 64], sizes = [8, 32], strides = [1, 1]} : vector<8x128xf32> to vector<8x32xf32>
    %354 = vector.extract_strided_slice %349 {offsets = [0, 96], sizes = [8, 32], strides = [1, 1]} : vector<8x128xf32> to vector<8x32xf32>
    %355 = arith.mulf %352, %320 : vector<8x32xf32>
    %356 = arith.mulf %351, %353 : vector<8x32xf32>
    %357 = arith.addf %355, %356 : vector<8x32xf32>
    %358 = math.tanh %357 : vector<8x32xf32>
    %359 = arith.mulf %354, %358 : vector<8x32xf32>
    %360 = arith.truncf %359 : vector<8x32xf32> to vector<8x32xbf16>
    %cst_42 = arith.constant dense<0.000000e+00> : vector<8x128xf32>
    %361 = tpu.matmul %360, %3, %cst_42 {dimension_numbers = #tpu.dot_dimension_numbers<[1], [0], [0], [1], [0, 0, 1, 1], [], []>} : vector<8x32xbf16>, vector<32x128xbf16>, vector<8x128xf32> -> vector<8x128xf32>
    %362 = vector.broadcast %15 : vector<1x128xf32> to vector<8x128xf32>
    %363 = arith.addf %361, %362 : vector<8x128xf32>
    %c0_43 = arith.constant 0 : index
    %c0_44 = arith.constant 0 : index
    %364 = vector.load %arg5[%c0_43, %c0_44] : memref<8x128xf32, #tpu.memory_space<vmem>>, vector<8x128xf32>
    tpu.vector_store %arg5[%c0_43, %c0_44], %363 {strides = array<i32>} : memref<8x128xf32, #tpu.memory_space<vmem>>, vector<8x128xf32>,
    return
  }
}

</mosaic_0001>

<llo_original>
// kernel: tpu_custom_call.1
$region0: #{tpu_custom_call.1}
  #allocation0 [shape = 'u32[]', space=smem, size = 0x4, offset = 0x4, fixed_abs, tag = 'smem constant byte address 0x4 - core index']
  #allocation1 [shape = 'u32[72,128]{1,0:T(1,128)}', space=vmem, size = 0x9000, scoped, tag = 'internal scratch']
  %s0 = inlined_call_operand.hbm [shape: f32[8,8], index: 0, kind: input, shape index: {}]
  %s1 = inlined_call_operand.hbm [shape: f32[4,128], index: 1, kind: input, shape index: {}]
  %s2 = inlined_call_operand.hbm [shape: bf16[32,256], index: 2, kind: input, shape index: {}]
  %s3 = inlined_call_operand.hbm [shape: bf16[32,128], index: 3, kind: input, shape index: {}]
  %s4 = inlined_call_operand.hbm [shape: bf16[32,128], index: 4, kind: input, shape index: {}]
  %s5 = inlined_call_operand.hbm [shape: f32[8,128], index: 5, kind: output, shape index: {}]
  %s6 = sld [smem:[#allocation0]]
  $region50: #{tpu_custom_call.1} parent=0
    _
  %s8 = ssub.s32 1, %s6
  %s9 = scalar_select 0, %s8, %s6
  $region1: #{tpu_custom_call.1} parent=0
    #allocation2 [shape = 'u8[4096]{0}', space=vmem, size = 0x1000, scoped, tag = 'input window, operand 0, single buffered']
    #allocation3 [shape = 's32[1]{0}', space=sflag, size = 0x4, scoped, tag = 'scoped memory for tpu_custom_call.1']
    #allocation4 [shape = 's32[1]{0}', space=sflag, size = 0x4, scoped, tag = 'scoped memory for tpu_custom_call.1']
    #allocation5 [shape = 'u8[2048]{0}', space=vmem, size = 0x800, scoped, tag = 'input window, operand 1, single buffered']
    #allocation6 [shape = 's32[1]{0}', space=sflag, size = 0x4, scoped, tag = 'scoped memory for tpu_custom_call.1']
    #allocation7 [shape = 'u8[16384]{0}', space=vmem, size = 0x4000, scoped, tag = 'input window, operand 2, single buffered']
    #allocation8 [shape = 'u8[8192]{0}', space=vmem, size = 0x2000, scoped, tag = 'input window, operand 3, single buffered']
    #allocation9 [shape = 's32[1]{0}', space=sflag, size = 0x4, scoped, tag = 'scoped memory for tpu_custom_call.1']
    #allocation10 [shape = 'u8[8192]{0}', space=vmem, size = 0x2000, scoped, tag = 'input window, operand 4, single buffered']
    #allocation11 [shape = 'u8[4096]{0}', space=vmem, size = 0x1000, scoped, tag = 'output window, operand 0, single buffered']
    %10 = vsyncpa [#allocation3], 0
    %11 = vsyncpa [#allocation6], 0
    %12 = vsyncpa [#allocation9], 0
    %13 = vsyncpa [#allocation4], 0
    // Predicated region
    $region2: #{tpu_custom_call.1} parent=1 // pred_check
      _
    $region3: #{tpu_custom_call.1} parent=1 // pred_check_branch
      %15 = sbr.rel (0) target = $region5
    $region4: #{tpu_custom_call.1} parent=1 // pred_region
      %17 = vsyncadd [#allocation3], 0
      %s19 = sshll.u32 %s0, 4
      %s20 = int_to_ptr.hbm [resolvable:$true] %s19
      %s21 = sshll.u32 [#allocation2], 4
      %s22 = int_to_ptr.vmem [resolvable:$true] %s21
      %24 = dma.hbm_to_vmem [thread:$0]  %s20, 128, %s22, [#allocation3]
    $region5: #{tpu_custom_call.1} parent=1 // pred_fallthru
      _
    // Predicated region
    $region6: #{tpu_custom_call.1} parent=1 // pred_check
      _
    $region7: #{tpu_custom_call.1} parent=1 // pred_check_branch
      %26 = sbr.rel (0) target = $region9
    $region8: #{tpu_custom_call.1} parent=1 // pred_region
      %28 = vsyncadd [#allocation6], 0
      %s30 = sshll.u32 %s1, 4
      %s31 = int_to_ptr.hbm [resolvable:$true] %s30
      %s32 = sshll.u32 [#allocation5], 4
      %s33 = int_to_ptr.vmem [resolvable:$true] %s32
      %35 = dma.hbm_to_vmem [thread:$0]  %s31, 64, %s33, [#allocation6]
    $region9: #{tpu_custom_call.1} parent=1 // pred_fallthru
      _
    // Predicated region
    $region10: #{tpu_custom_call.1} parent=1 // pred_check
      _
    $region11: #{tpu_custom_call.1} parent=1 // pred_check_branch
      %37 = sbr.rel (0) target = $region13
    $region12: #{tpu_custom_call.1} parent=1 // pred_region
      %39 = vsyncadd [#allocation6], 0
      %s40 = sshll.u32 %s2, 4
      %s41 = int_to_ptr.hbm [resolvable:$true] %s40
      %s42 = sshll.u32 [#allocation7], 4
      %s43 = int_to_ptr.vmem [resolvable:$true] %s42
      %48 = dma.hbm_to_vmem [thread:$0]  %s41, 512, %s43, [#allocation6], 128, 128, 8
    $region13: #{tpu_custom_call.1} parent=1 // pred_fallthru
      _
    // Predicated region
    $region14: #{tpu_custom_call.1} parent=1 // pred_check
      _
    $region15: #{tpu_custom_call.1} parent=1 // pred_check_branch
      %50 = sbr.rel (0) target = $region17
    $region16: #{tpu_custom_call.1} parent=1 // pred_region
      %52 = vsyncadd [#allocation9], 0
      %s53 = sshll.u32 %s3, 4
      %s54 = int_to_ptr.hbm [resolvable:$true] %s53
      %s55 = sshll.u32 [#allocation8], 4
      %s56 = int_to_ptr.vmem [resolvable:$true] %s55
      %61 = dma.hbm_to_vmem [thread:$0]  %s54, 256, %s56, [#allocation9], 64, 64, 4
    $region17: #{tpu_custom_call.1} parent=1 // pred_fallthru
      _
    // Predicated region
    $region18: #{tpu_custom_call.1} parent=1 // pred_check
      _
    $region19: #{tpu_custom_call.1} parent=1 // pred_check_branch
      %63 = sbr.rel (0) target = $region21
    $region20: #{tpu_custom_call.1} parent=1 // pred_region
      %65 = vsyncadd [#allocation9], 0
      %s66 = sshll.u32 %s4, 4
      %s67 = int_to_ptr.hbm [resolvable:$true] %s66
      %s68 = sshll.u32 [#allocation10], 4
      %s69 = int_to_ptr.vmem [resolvable:$true] %s68
      %74 = dma.hbm_to_vmem [thread:$0]  %s67, 256, %s69, [#allocation9], 64, 64, 4
    $region21: #{tpu_custom_call.1} parent=1 // pred_fallthru
      _
    // Predicated region
    $region22: #{tpu_custom_call.1} parent=1 // pred_check
      _
    $region23: #{tpu_custom_call.1} parent=1 // pred_check_branch
      %76 = sbr.rel (0) target = $region25
    $region24: #{tpu_custom_call.1} parent=1 // pred_region
      %78 = dma.done [#allocation3], 128
    $region25: #{tpu_custom_call.1} parent=1 // pred_fallthru
      _
    // Predicated region
    $region26: #{tpu_custom_call.1} parent=1 // pred_check
      _
    $region27: #{tpu_custom_call.1} parent=1 // pred_check_branch
      %80 = sbr.rel (0) target = $region29
    $region28: #{tpu_custom_call.1} parent=1 // pred_region
      %82 = dma.done [#allocation6], 64
    $region29: #{tpu_custom_call.1} parent=1 // pred_fallthru
      _
    // Predicated region
    $region30: #{tpu_custom_call.1} parent=1 // pred_check
      _
    $region31: #{tpu_custom_call.1} parent=1 // pred_check_branch
      %84 = sbr.rel (0) target = $region33
    $region32: #{tpu_custom_call.1} parent=1 // pred_region
      %86 = dma.done [#allocation6], 512
    $region33: #{tpu_custom_call.1} parent=1 // pred_fallthru
      _
    // Predicated region
    $region34: #{tpu_custom_call.1} parent=1 // pred_check
      _
    $region35: #{tpu_custom_call.1} parent=1 // pred_check_branch
      %88 = sbr.rel (0) target = $region37
    $region36: #{tpu_custom_call.1} parent=1 // pred_region
      %90 = dma.done [#allocation9], 256
    $region37: #{tpu_custom_call.1} parent=1 // pred_fallthru
      _
    // Predicated region
    $region38: #{tpu_custom_call.1} parent=1 // pred_check
      _
    $region39: #{tpu_custom_call.1} parent=1 // pred_check_branch
      %92 = sbr.rel (0) target = $region41
    $region40: #{tpu_custom_call.1} parent=1 // pred_region
      %94 = dma.done [#allocation9], 256
    $region41: #{tpu_custom_call.1} parent=1 // pred_fallthru
      _
    %v96 = vld [vmem:[#allocation2] sm:$0xff]
    %v97 = vld [vmem:[#allocation7] sm:$0xff]
    %v98 = vld [vmem:[#allocation7 + $0x8] sm:$0xff]
    %v99 = vld [vmem:[#allocation7 + $0x10] sm:$0xff]
    %v100 = vld [vmem:[#allocation7 + $0x18] sm:$0xff]
    %v101 = vld [vmem:[#allocation8] sm:$0xf]
    %v102 = vld [vmem:[#allocation8 + $0x4] sm:$0xf]
    %v103 = vld [vmem:[#allocation8 + $0x8] sm:$0xf]
    %v104 = vld [vmem:[#allocation8 + $0xc] sm:$0xf]
    %v105 = vld [vmem:[#allocation10] sm:$0xf]
    %v106 = vld [vmem:[#allocation10 + $0x4] sm:$0xf]
    %v107 = vld [vmem:[#allocation10 + $0x8] sm:$0xf]
    %v108 = vld [vmem:[#allocation10 + $0xc] sm:$0xf]
    %v109 = vld [vmem:[#allocation5] sm:$0xf]
    %v110 = vperm.slane %v109, 0
    %v111 = vperm.slane %v109, 1
    %v112 = vperm.slane %v109, 2
    %114 = vset.pattern.permute.xlu0 0
    %115 = vperm.xlu0 %114, %v96
    %v116 = vpop.permute.xlu0 %115
    %v118 = vmul.f32 %v116, %v110
    %v119 = vadd.f32 %v118, %v111
    %120 = vset.pattern.permute.xlu0 1
    %121 = vperm.xlu0 %120, %v96
    %v122 = vpop.permute.xlu0 %121
    %v124 = vmul.f32 %v122, %v110
    %v125 = vadd.f32 %v124, %v111
    %126 = vset.pattern.permute.xlu0 2
    %127 = vperm.xlu0 %126, %v96
    %v128 = vpop.permute.xlu0 %127
    %v130 = vmul.f32 %v128, %v110
    %v131 = vadd.f32 %v130, %v111
    %132 = vset.pattern.permute.xlu0 3
    %133 = vperm.xlu0 %132, %v96
    %v134 = vpop.permute.xlu0 %133
    %v136 = vmul.f32 %v134, %v110
    %v137 = vadd.f32 %v136, %v111
    %138 = vset.pattern.permute.xlu0 4
    %139 = vperm.xlu0 %138, %v96
    %v140 = vpop.permute.xlu0 %139
    %v142 = vmul.f32 %v140, %v110
    %v143 = vadd.f32 %v142, %v111
    %144 = vset.pattern.permute.xlu0 5
    %145 = vperm.xlu0 %144, %v96
    %v146 = vpop.permute.xlu0 %145
    %v148 = vmul.f32 %v146, %v110
    %v149 = vadd.f32 %v148, %v111
    %150 = vset.pattern.permute.xlu0 6
    %151 = vperm.xlu0 %150, %v96
    %v152 = vpop.permute.xlu0 %151
    %v154 = vmul.f32 %v152, %v110
    %v155 = vadd.f32 %v154, %v111
    %156 = vset.pattern.permute.xlu0 7
    %157 = vperm.xlu0 %156, %v96
    %v158 = vpop.permute.xlu0 %157
    %v160 = vmul.f32 %v158, %v110
    %v161 = vadd.f32 %v160, %v111
    %v162 = vadd.f32 %v119, 0.0
    %v163 = vxor.u32 %v162, 2147483648
    %v164 = vmul.f32 %v163, 1.442695
    %v165 = vpow.pop %v164
    %v166 = vadd.f32 %v165, 1.0
    %v167 = vrcp.pop %v166
    %v168 = vmul.f32 %v166, %v167
    %v169 = vsub.f32 1.0, %v168
    %v170 = vmul.f32 %v167, %v169
    %v171 = vadd.f32 %v167, %v170
    %vm172 = vweird.f32 %v166
    %vm173 = vweird.f32 %v167
    %vm174 = vmor %vm172, %vm173
    %v175 = vsel %vm174, %v167, %v171
    %v176 = vand.u32 2147483647, %v166
    %vm177 = vcmp.eq.f32.partialorder %v176, 8.507059e+37
    %v178 = vand.u32 %v166, 2147483648
    %v179 = vor.u32 1.1754944e-38, %v178
    %v180 = vsel %vm177, %v179, %v175
    %v181 = vmul.f32 1.0, %v180
    %v182 = vtanh.pop %v162
    %v183 = vmul.f32 %v181, 0.0
    %185 = vrot.lane.b32.xlu0 %v182, 64
    %v186 = vpop.permute.xlu0 %185
    %v188 = vmul.f32 %v181, %v186
    %190 = vrot.lane.b32.xlu0 %v188, 32
    %v191 = vpop.permute.xlu0 %190
    %v193 = vadd.f32 %v183, %v191
    %v194 = vtanh.pop %v193
    %196 = vrot.lane.b32.xlu0 %v194, 64
    %v197 = vpop.permute.xlu0 %196
    %v199 = vmul.f32 %v181, %v197
    %v200 = vpack.c.bf16 %v199, %v199
    %v205 = vunpack.c.l.b16 %v101
    %v206 = vunpack.c.l.b16 %v102
    %v207 = vunpack.c.l.b16 %v103
    %v208 = vunpack.c.l.b16 %v104
    %v209 = vpack.c.b16 %v206, %v205
    %v210 = vpack.c.b16 %v208, %v207
    %vm213 = vcmask 261120
    %v215 = vsel %vm213, 0, 0
    %217 = vmatpush.bf16.msra.mxu0 0
    %218 = vmatpush.bf16.msra.mxu0 0
    %219 = vmatpush.bf16.msra.mxu0 0
    %220 = vmatpush.bf16.msra.mxu0 0
    %221 = vmatpush.bf16.msra.mxu0 0
    %222 = vmatpush.bf16.msra.mxu0 0
    %223 = vmatpush.bf16.msra.mxu0 %v210
    %224 = vmatpush.bf16.msra.mxu0 %v209
    %225 = vmatmul.bf16.gmra.mxu0 %v215
    %v226 = vpop.f32.mrf.mxu0
    %v227 = vadd.f32 0.0, %v226
    %v228 = vpop.f32.mrf.mxu0
    %229 = vdwg.mxu0
    %231 = vrot.lane.b32.xlu0 %v200, 32
    %v232 = vpop.permute.xlu0 %231
    %v237 = vunpack.c.l.b16 %v97
    %v238 = vunpack.c.h.b16 %v97
    %v239 = vunpack.c.l.b16 %v98
    %v240 = vunpack.c.h.b16 %v98
    %v241 = vunpack.c.l.b16 %v99
    %v242 = vunpack.c.h.b16 %v99
    %v243 = vunpack.c.l.b16 %v100
    %v244 = vunpack.c.h.b16 %v100
    %v245 = vpack.c.b16 %v239, %v237
    %v246 = vpack.c.b16 %v240, %v238
    %v247 = vpack.c.b16 %v243, %v241
    %v248 = vpack.c.b16 %v244, %v242
    %v254 = vsel %vm213, %v232, 0
    %256 = vmatpush.bf16.msra.mxu0 0
    %257 = vmatpush.bf16.msra.mxu0 0
    %258 = vmatpush.bf16.msra.mxu0 0
    %259 = vmatpush.bf16.msra.mxu0 0
    %260 = vmatpush.bf16.msra.mxu0 0
    %261 = vmatpush.bf16.msra.mxu0 0
    %262 = vmatpush.bf16.msra.mxu0 %v247
    %263 = vmatpush.bf16.msra.mxu0 %v245
    %264 = vmatmul.bf16.gmra.mxu0 %v254
    %v265 = vpop.f32.mrf.mxu0
    %v266 = vadd.f32 0.0, %v265
    %v267 = vpop.f32.mrf.mxu0
    %268 = vdwg.mxu0
    %269 = vmatpush.bf16.msra.mxu0 0
    %270 = vmatpush.bf16.msra.mxu0 0
    %271 = vmatpush.bf16.msra.mxu0 0
    %272 = vmatpush.bf16.msra.mxu0 0
    %273 = vmatpush.bf16.msra.mxu0 0
    %274 = vmatpush.bf16.msra.mxu0 0
    %275 = vmatpush.bf16.msra.mxu0 %v248
    %276 = vmatpush.bf16.msra.mxu0 %v246
    %277 = vmatmul.bf16.gmra.mxu0 %v254
    %v278 = vpop.f32.mrf.mxu0
    %v279 = vadd.f32 0.0, %v278
    %v280 = vpop.f32.mrf.mxu0
    %281 = vdwg.mxu0
    %v282 = vadd.f32 %v266, %v227
    %v283 = vadd.f32 %v282, %v112
    %v284 = vxor.u32 %v283, 2147483648
    %v285 = vmul.f32 %v284, 1.442695
    %v286 = vpow.pop %v285
    %v287 = vadd.f32 %v286, 1.0
    %v288 = vrcp.pop %v287
    %v289 = vmul.f32 %v287, %v288
    %v290 = vsub.f32 1.0, %v289
    %v291 = vmul.f32 %v288, %v290
    %v292 = vadd.f32 %v288, %v291
    %vm293 = vweird.f32 %v287
    %vm294 = vweird.f32 %v288
    %vm295 = vmor %vm293, %vm294
    %v296 = vsel %vm295, %v288, %v292
    %v297 = vand.u32 2147483647, %v287
    %vm298 = vcmp.eq.f32.partialorder %v297, 8.507059e+37
    %v299 = vand.u32 %v287, 2147483648
    %v300 = vor.u32 1.1754944e-38, %v299
    %v301 = vsel %vm298, %v300, %v296
    %v302 = vmul.f32 1.0, %v301
    %v303 = vtanh.pop %v283
    %v304 = vmul.f32 %v302, 0.0
    %306 = vrot.lane.b32.xlu0 %v303, 64
    %v307 = vpop.permute.xlu0 %306
    %v309 = vmul.f32 %v302, %v307
    %311 = vrot.lane.b32.xlu0 %v309, 32
    %v312 = vpop.permute.xlu0 %311
    %v314 = vadd.f32 %v304, %v312
    %v315 = vtanh.pop %v314
    %317 = vrot.lane.b32.xlu0 %v315, 64
    %v318 = vpop.permute.xlu0 %317
    %v320 = vmul.f32 %v302, %v318
    %v321 = vadd.f32 %v125, %v279
    %v322 = vxor.u32 %v321, 2147483648
    %v323 = vmul.f32 %v322, 1.442695
    %v324 = vpow.pop %v323
    %v325 = vadd.f32 %v324, 1.0
    %v326 = vrcp.pop %v325
    %v327 = vmul.f32 %v325, %v326
    %v328 = vsub.f32 1.0, %v327
    %v329 = vmul.f32 %v326, %v328
    %v330 = vadd.f32 %v326, %v329
    %vm331 = vweird.f32 %v325
    %vm332 = vweird.f32 %v326
    %vm333 = vmor %vm331, %vm332
    %v334 = vsel %vm333, %v326, %v330
    %v335 = vand.u32 2147483647, %v325
    %vm336 = vcmp.eq.f32.partialorder %v335, 8.507059e+37
    %v337 = vand.u32 %v325, 2147483648
    %v338 = vor.u32 1.1754944e-38, %v337
    %v339 = vsel %vm336, %v338, %v334
    %v340 = vmul.f32 1.0, %v339
    %v341 = vtanh.pop %v321
    %v342 = vmul.f32 %v340, %v193
    %344 = vrot.lane.b32.xlu0 %v341, 64
    %v345 = vpop.permute.xlu0 %344
    %v347 = vmul.f32 %v340, %v345
    %349 = vrot.lane.b32.xlu0 %v347, 32
    %v350 = vpop.permute.xlu0 %349
    %v352 = vadd.f32 %v342, %v350
    %v353 = vtanh.pop %v352
    %355 = vrot.lane.b32.xlu0 %v353, 64
    %v356 = vpop.permute.xlu0 %355
    %v358 = vmul.f32 %v340, %v356
    %v359 = vpack.c.bf16 %v358, %v358
    %v360 = vpack.c.bf16 %v320, %v320
    %362 = vrot.lane.b32.xlu0 %v360, 32
    %v363 = vpop.permute.xlu0 %362
    %v365 = vsel %vm213, %v363, 0
    %367 = vmatpush.bf16.msra.mxu0 0
    %368 = vmatpush.bf16.msra.mxu0 0
    %369 = vmatpush.bf16.msra.mxu0 0
    %370 = vmatpush.bf16.msra.mxu0 0
    %371 = vmatpush.bf16.msra.mxu0 0
    %372 = vmatpush.bf16.msra.mxu0 0
    %373 = vmatpush.bf16.msra.mxu0 %v210
    %374 = vmatpush.bf16.msra.mxu0 %v209
    %375 = vmatmul.bf16.gmra.mxu0 %v365
    %v376 = vpop.f32.mrf.mxu0
    %v377 = vadd.f32 0.0, %v376
    %v378 = vpop.f32.mrf.mxu0
    %379 = vdwg.mxu0
    %381 = vrot.lane.b32.xlu0 %v359, 32
    %v382 = vpop.permute.xlu0 %381
    %v384 = vsel %vm213, %v382, 0
    %386 = vmatpush.bf16.msra.mxu0 0
    %387 = vmatpush.bf16.msra.mxu0 0
    %388 = vmatpush.bf16.msra.mxu0 0
    %389 = vmatpush.bf16.msra.mxu0 0
    %390 = vmatpush.bf16.msra.mxu0 0
    %391 = vmatpush.bf16.msra.mxu0 0
    %392 = vmatpush.bf16.msra.mxu0 %v247
    %393 = vmatpush.bf16.msra.mxu0 %v245
    %394 = vmatmul.bf16.gmra.mxu0 %v384
    %v395 = vpop.f32.mrf.mxu0
    %v396 = vadd.f32 0.0, %v395
    %v397 = vpop.f32.mrf.mxu0
    %398 = vdwg.mxu0
    %399 = vmatpush.bf16.msra.mxu0 0
    %400 = vmatpush.bf16.msra.mxu0 0
    %401 = vmatpush.bf16.msra.mxu0 0
    %402 = vmatpush.bf16.msra.mxu0 0
    %403 = vmatpush.bf16.msra.mxu0 0
    %404 = vmatpush.bf16.msra.mxu0 0
    %405 = vmatpush.bf16.msra.mxu0 %v248
    %406 = vmatpush.bf16.msra.mxu0 %v246
    %407 = vmatmul.bf16.gmra.mxu0 %v384
    %v408 = vpop.f32.mrf.mxu0
    %v409 = vadd.f32 0.0, %v408
    %v410 = vpop.f32.mrf.mxu0
    %411 = vdwg.mxu0
    %v412 = vadd.f32 %v396, %v377
    %v413 = vadd.f32 %v412, %v112
    %v414 = vxor.u32 %v413, 2147483648
    %v415 = vmul.f32 %v414, 1.442695
    %v416 = vpow.pop %v415
    %v417 = vadd.f32 %v416, 1.0
    %v418 = vrcp.pop %v417
    %v419 = vmul.f32 %v417, %v418
    %v420 = vsub.f32 1.0, %v419
    %v421 = vmul.f32 %v418, %v420
    %v422 = vadd.f32 %v418, %v421
    %vm423 = vweird.f32 %v417
    %vm424 = vweird.f32 %v418
    %vm425 = vmor %vm423, %vm424
    %v426 = vsel %vm425, %v418, %v422
    %v427 = vand.u32 2147483647, %v417
    %vm428 = vcmp.eq.f32.partialorder %v427, 8.507059e+37
    %v429 = vand.u32 %v417, 2147483648
    %v430 = vor.u32 1.1754944e-38, %v429
    %v431 = vsel %vm428, %v430, %v426
    %v432 = vmul.f32 1.0, %v431
    %v433 = vtanh.pop %v413
    %v434 = vmul.f32 %v432, %v314
    %436 = vrot.lane.b32.xlu0 %v433, 64
    %v437 = vpop.permute.xlu0 %436
    %v439 = vmul.f32 %v432, %v437
    %441 = vrot.lane.b32.xlu0 %v439, 32
    %v442 = vpop.permute.xlu0 %441
    %v444 = vadd.f32 %v434, %v442
    %v445 = vtanh.pop %v444
    %447 = vrot.lane.b32.xlu0 %v445, 64
    %v448 = vpop.permute.xlu0 %447
    %v450 = vmul.f32 %v432, %v448
    %v451 = vadd.f32 %v131, %v409
    %v452 = vxor.u32 %v451, 2147483648
    %v453 = vmul.f32 %v452, 1.442695
    %v454 = vpow.pop %v453
    %v455 = vadd.f32 %v454, 1.0
    %v456 = vrcp.pop %v455
    %v457 = vmul.f32 %v455, %v456
    %v458 = vsub.f32 1.0, %v457
    %v459 = vmul.f32 %v456, %v458
    %v460 = vadd.f32 %v456, %v459
    %vm461 = vweird.f32 %v455
    %vm462 = vweird.f32 %v456
    %vm463 = vmor %vm461, %vm462
    %v464 = vsel %vm463, %v456, %v460
    %v465 = vand.u32 2147483647, %v455
    %vm466 = vcmp.eq.f32.partialorder %v465, 8.507059e+37
    %v467 = vand.u32 %v455, 2147483648
    %v468 = vor.u32 1.1754944e-38, %v467
    %v469 = vsel %vm466, %v468, %v464
    %v470 = vmul.f32 1.0, %v469
    %v471 = vtanh.pop %v451
    %v472 = vmul.f32 %v470, %v352
    %474 = vrot.lane.b32.xlu0 %v471, 64
    %v475 = vpop.permute.xlu0 %474
    %v477 = vmul.f32 %v470, %v475
    %479 = vrot.lane.b32.xlu0 %v477, 32
    %v480 = vpop.permute.xlu0 %479
    %v482 = vadd.f32 %v472, %v480
    %v483 = vtanh.pop %v482
    %485 = vrot.lane.b32.xlu0 %v483, 64
    %v486 = vpop.permute.xlu0 %485
    %v488 = vmul.f32 %v470, %v486
    %v489 = vpack.c.bf16 %v488, %v488
    %v490 = vpack.c.bf16 %v450, %v450
    %492 = vrot.lane.b32.xlu0 %v490, 32
    %v493 = vpop.permute.xlu0 %492
    %v495 = vsel %vm213, %v493, 0
    %497 = vmatpush.bf16.msra.mxu0 0
    %498 = vmatpush.bf16.msra.mxu0 0
    %499 = vmatpush.bf16.msra.mxu0 0
    %500 = vmatpush.bf16.msra.mxu0 0
    %501 = vmatpush.bf16.msra.mxu0 0
    %502 = vmatpush.bf16.msra.mxu0 0
    %503 = vmatpush.bf16.msra.mxu0 %v210
    %504 = vmatpush.bf16.msra.mxu0 %v209
    %505 = vmatmul.bf16.gmra.mxu0 %v495
    %v506 = vpop.f32.mrf.mxu0
    %v507 = vadd.f32 0.0, %v506
    %v508 = vpop.f32.mrf.mxu0
    %509 = vdwg.mxu0
    %511 = vrot.lane.b32.xlu0 %v489, 32
    %v512 = vpop.permute.xlu0 %511
    %v514 = vsel %vm213, %v512, 0
    %516 = vmatpush.bf16.msra.mxu0 0
    %517 = vmatpush.bf16.msra.mxu0 0
    %518 = vmatpush.bf16.msra.mxu0 0
    %519 = vmatpush.bf16.msra.mxu0 0
    %520 = vmatpush.bf16.msra.mxu0 0
    %521 = vmatpush.bf16.msra.mxu0 0
    %522 = vmatpush.bf16.msra.mxu0 %v247
    %523 = vmatpush.bf16.msra.mxu0 %v245
    %524 = vmatmul.bf16.gmra.mxu0 %v514
    %v525 = vpop.f32.mrf.mxu0
    %v526 = vadd.f32 0.0, %v525
    %v527 = vpop.f32.mrf.mxu0
    %528 = vdwg.mxu0
    %529 = vmatpush.bf16.msra.mxu0 0
    %530 = vmatpush.bf16.msra.mxu0 0
    %531 = vmatpush.bf16.msra.mxu0 0
    %532 = vmatpush.bf16.msra.mxu0 0
    %533 = vmatpush.bf16.msra.mxu0 0
    %534 = vmatpush.bf16.msra.mxu0 0
    %535 = vmatpush.bf16.msra.mxu0 %v248
    %536 = vmatpush.bf16.msra.mxu0 %v246
    %537 = vmatmul.bf16.gmra.mxu0 %v514
    %v538 = vpop.f32.mrf.mxu0
    %v539 = vadd.f32 0.0, %v538
    %v540 = vpop.f32.mrf.mxu0
    %541 = vdwg.mxu0
    %v542 = vadd.f32 %v526, %v507
    %v543 = vadd.f32 %v542, %v112
    %v544 = vxor.u32 %v543, 2147483648
    %v545 = vmul.f32 %v544, 1.442695
    %v546 = vpow.pop %v545
    %v547 = vadd.f32 %v546, 1.0
    %v548 = vrcp.pop %v547
    %v549 = vmul.f32 %v547, %v548
    %v550 = vsub.f32 1.0, %v549
    %v551 = vmul.f32 %v548, %v550
    %v552 = vadd.f32 %v548, %v551
    %vm553 = vweird.f32 %v547
    %vm554 = vweird.f32 %v548
    %vm555 = vmor %vm553, %vm554
    %v556 = vsel %vm555, %v548, %v552
    %v557 = vand.u32 2147483647, %v547
    %vm558 = vcmp.eq.f32.partialorder %v557, 8.507059e+37
    %v559 = vand.u32 %v547, 2147483648
    %v560 = vor.u32 1.1754944e-38, %v559
    %v561 = vsel %vm558, %v560, %v556
    %v562 = vmul.f32 1.0, %v561
    %v563 = vtanh.pop %v543
    %v564 = vmul.f32 %v562, %v444
    %566 = vrot.lane.b32.xlu0 %v563, 64
    %v567 = vpop.permute.xlu0 %566
    %v569 = vmul.f32 %v562, %v567
    %571 = vrot.lane.b32.xlu0 %v569, 32
    %v572 = vpop.permute.xlu0 %571
    %v574 = vadd.f32 %v564, %v572
    %v575 = vtanh.pop %v574
    %577 = vrot.lane.b32.xlu0 %v575, 64
    %v578 = vpop.permute.xlu0 %577
    %v580 = vmul.f32 %v562, %v578
    %v581 = vadd.f32 %v137, %v539
    %v582 = vxor.u32 %v581, 2147483648
    %v583 = vmul.f32 %v582, 1.442695
    %v584 = vpow.pop %v583
    %v585 = vadd.f32 %v584, 1.0
    %v586 = vrcp.pop %v585
    %v587 = vmul.f32 %v585, %v586
    %v588 = vsub.f32 1.0, %v587
    %v589 = vmul.f32 %v586, %v588
    %v590 = vadd.f32 %v586, %v589
    %vm591 = vweird.f32 %v585
    %vm592 = vweird.f32 %v586
    %vm593 = vmor %vm591, %vm592
    %v594 = vsel %vm593, %v586, %v590
    %v595 = vand.u32 2147483647, %v585
    %vm596 = vcmp.eq.f32.partialorder %v595, 8.507059e+37
    %v597 = vand.u32 %v585, 2147483648
    %v598 = vor.u32 1.1754944e-38, %v597
    %v599 = vsel %vm596, %v598, %v594
    %v600 = vmul.f32 1.0, %v599
    %v601 = vtanh.pop %v581
    %v602 = vmul.f32 %v600, %v482
    %604 = vrot.lane.b32.xlu0 %v601, 64
    %v605 = vpop.permute.xlu0 %604
    %v607 = vmul.f32 %v600, %v605
    %609 = vrot.lane.b32.xlu0 %v607, 32
    %v610 = vpop.permute.xlu0 %609
    %v612 = vadd.f32 %v602, %v610
    %v613 = vtanh.pop %v612
    %615 = vrot.lane.b32.xlu0 %v613, 64
    %v616 = vpop.permute.xlu0 %615
    %v618 = vmul.f32 %v600, %v616
    %v619 = vpack.c.bf16 %v618, %v618
    %v620 = vpack.c.bf16 %v580, %v580
    %622 = vrot.lane.b32.xlu0 %v620, 32
    %v623 = vpop.permute.xlu0 %622
    %v625 = vsel %vm213, %v623, 0
    %627 = vmatpush.bf16.msra.mxu0 0
    %628 = vmatpush.bf16.msra.mxu0 0
    %629 = vmatpush.bf16.msra.mxu0 0
    %630 = vmatpush.bf16.msra.mxu0 0
    %631 = vmatpush.bf16.msra.mxu0 0
    %632 = vmatpush.bf16.msra.mxu0 0
    %633 = vmatpush.bf16.msra.mxu0 %v210
    %634 = vmatpush.bf16.msra.mxu0 %v209
    %635 = vmatmul.bf16.gmra.mxu0 %v625
    %v636 = vpop.f32.mrf.mxu0
    %v637 = vadd.f32 0.0, %v636
    %v638 = vpop.f32.mrf.mxu0
    %639 = vdwg.mxu0
    %641 = vrot.lane.b32.xlu0 %v619, 32
    %v642 = vpop.permute.xlu0 %641
    %v644 = vsel %vm213, %v642, 0
    %646 = vmatpush.bf16.msra.mxu0 0
    %647 = vmatpush.bf16.msra.mxu0 0
    %648 = vmatpush.bf16.msra.mxu0 0
    %649 = vmatpush.bf16.msra.mxu0 0
    %650 = vmatpush.bf16.msra.mxu0 0
    %651 = vmatpush.bf16.msra.mxu0 0
    %652 = vmatpush.bf16.msra.mxu0 %v247
    %653 = vmatpush.bf16.msra.mxu0 %v245
    %654 = vmatmul.bf16.gmra.mxu0 %v644
    %v655 = vpop.f32.mrf.mxu0
    %v656 = vadd.f32 0.0, %v655
    %v657 = vpop.f32.mrf.mxu0
    %658 = vdwg.mxu0
    %659 = vmatpush.bf16.msra.mxu0 0
    %660 = vmatpush.bf16.msra.mxu0 0
    %661 = vmatpush.bf16.msra.mxu0 0
    %662 = vmatpush.bf16.msra.mxu0 0
    %663 = vmatpush.bf16.msra.mxu0 0
    %664 = vmatpush.bf16.msra.mxu0 0
    %665 = vmatpush.bf16.msra.mxu0 %v248
    %666 = vmatpush.bf16.msra.mxu0 %v246
    %667 = vmatmul.bf16.gmra.mxu0 %v644
    %v668 = vpop.f32.mrf.mxu0
    %v669 = vadd.f32 0.0, %v668
    %v670 = vpop.f32.mrf.mxu0
    %671 = vdwg.mxu0
    %v672 = vadd.f32 %v656, %v637
    %v673 = vadd.f32 %v672, %v112
    %v674 = vxor.u32 %v673, 2147483648
    %v675 = vmul.f32 %v674, 1.442695
    %v676 = vpow.pop %v675
    %v677 = vadd.f32 %v676, 1.0
    %v678 = vrcp.pop %v677
    %v679 = vmul.f32 %v677, %v678
    %v680 = vsub.f32 1.0, %v679
    %v681 = vmul.f32 %v678, %v680
    %v682 = vadd.f32 %v678, %v681
    %vm683 = vweird.f32 %v677
    %vm684 = vweird.f32 %v678
    %vm685 = vmor %vm683, %vm684
    %v686 = vsel %vm685, %v678, %v682
    %v687 = vand.u32 2147483647, %v677
    %vm688 = vcmp.eq.f32.partialorder %v687, 8.507059e+37
    %v689 = vand.u32 %v677, 2147483648
    %v690 = vor.u32 1.1754944e-38, %v689
    %v691 = vsel %vm688, %v690, %v686
    %v692 = vmul.f32 1.0, %v691
    %v693 = vtanh.pop %v673
    %v694 = vmul.f32 %v692, %v574
    %696 = vrot.lane.b32.xlu0 %v693, 64
    %v697 = vpop.permute.xlu0 %696
    %v699 = vmul.f32 %v692, %v697
    %701 = vrot.lane.b32.xlu0 %v699, 32
    %v702 = vpop.permute.xlu0 %701
    %v704 = vadd.f32 %v694, %v702
    %v705 = vtanh.pop %v704
    %707 = vrot.lane.b32.xlu0 %v705, 64
    %v708 = vpop.permute.xlu0 %707
    %v710 = vmul.f32 %v692, %v708
    %v711 = vadd.f32 %v143, %v669
    %v712 = vxor.u32 %v711, 2147483648
    %v713 = vmul.f32 %v712, 1.442695
    %v714 = vpow.pop %v713
    %v715 = vadd.f32 %v714, 1.0
    %v716 = vrcp.pop %v715
    %v717 = vmul.f32 %v715, %v716
    %v718 = vsub.f32 1.0, %v717
    %v719 = vmul.f32 %v716, %v718
    %v720 = vadd.f32 %v716, %v719
    %vm721 = vweird.f32 %v715
    %vm722 = vweird.f32 %v716
    %vm723 = vmor %vm721, %vm722
    %v724 = vsel %vm723, %v716, %v720
    %v725 = vand.u32 2147483647, %v715
    %vm726 = vcmp.eq.f32.partialorder %v725, 8.507059e+37
    %v727 = vand.u32 %v715, 2147483648
    %v728 = vor.u32 1.1754944e-38, %v727
    %v729 = vsel %vm726, %v728, %v724
    %v730 = vmul.f32 1.0, %v729
    %v731 = vtanh.pop %v711
    %v732 = vmul.f32 %v730, %v612
    %734 = vrot.lane.b32.xlu0 %v731, 64
    %v735 = vpop.permute.xlu0 %734
    %v737 = vmul.f32 %v730, %v735
    %739 = vrot.lane.b32.xlu0 %v737, 32
    %v740 = vpop.permute.xlu0 %739
    %v742 = vadd.f32 %v732, %v740
    %v743 = vtanh.pop %v742
    %745 = vrot.lane.b32.xlu0 %v743, 64
    %v746 = vpop.permute.xlu0 %745
    %v748 = vmul.f32 %v730, %v746
    %v749 = vpack.c.bf16 %v748, %v748
    %v750 = vpack.c.bf16 %v710, %v710
    %752 = vrot.lane.b32.xlu0 %v750, 32
    %v753 = vpop.permute.xlu0 %752
    %v755 = vsel %vm213, %v753, 0
    %757 = vmatpush.bf16.msra.mxu0 0
    %758 = vmatpush.bf16.msra.mxu0 0
    %759 = vmatpush.bf16.msra.mxu0 0
    %760 = vmatpush.bf16.msra.mxu0 0
    %761 = vmatpush.bf16.msra.mxu0 0
    %762 = vmatpush.bf16.msra.mxu0 0
    %763 = vmatpush.bf16.msra.mxu0 %v210
    %764 = vmatpush.bf16.msra.mxu0 %v209
    %765 = vmatmul.bf16.gmra.mxu0 %v755
    %v766 = vpop.f32.mrf.mxu0
    %v767 = vadd.f32 0.0, %v766
    %v768 = vpop.f32.mrf.mxu0
    %769 = vdwg.mxu0
    %771 = vrot.lane.b32.xlu0 %v749, 32
    %v772 = vpop.permute.xlu0 %771
    %v774 = vsel %vm213, %v772, 0
    %776 = vmatpush.bf16.msra.mxu0 0
    %777 = vmatpush.bf16.msra.mxu0 0
    %778 = vmatpush.bf16.msra.mxu0 0
    %779 = vmatpush.bf16.msra.mxu0 0
    %780 = vmatpush.bf16.msra.mxu0 0
    %781 = vmatpush.bf16.msra.mxu0 0
    %782 = vmatpush.bf16.msra.mxu0 %v247
    %783 = vmatpush.bf16.msra.mxu0 %v245
    %784 = vmatmul.bf16.gmra.mxu0 %v774
    %v785 = vpop.f32.mrf.mxu0
    %v786 = vadd.f32 0.0, %v785
    %v787 = vpop.f32.mrf.mxu0
    %788 = vdwg.mxu0
    %789 = vmatpush.bf16.msra.mxu0 0
    %790 = vmatpush.bf16.msra.mxu0 0
    %791 = vmatpush.bf16.msra.mxu0 0
    %792 = vmatpush.bf16.msra.mxu0 0
    %793 = vmatpush.bf16.msra.mxu0 0
    %794 = vmatpush.bf16.msra.mxu0 0
    %795 = vmatpush.bf16.msra.mxu0 %v248
    %796 = vmatpush.bf16.msra.mxu0 %v246
    %797 = vmatmul.bf16.gmra.mxu0 %v774
    %v798 = vpop.f32.mrf.mxu0
    %v799 = vadd.f32 0.0, %v798
    %v800 = vpop.f32.mrf.mxu0
    %801 = vdwg.mxu0
    %v802 = vadd.f32 %v786, %v767
    %v803 = vadd.f32 %v802, %v112
    %v804 = vxor.u32 %v803, 2147483648
    %v805 = vmul.f32 %v804, 1.442695
    %v806 = vpow.pop %v805
    %v807 = vadd.f32 %v806, 1.0
    %v808 = vrcp.pop %v807
    %v809 = vmul.f32 %v807, %v808
    %v810 = vsub.f32 1.0, %v809
    %v811 = vmul.f32 %v808, %v810
    %v812 = vadd.f32 %v808, %v811
    %vm813 = vweird.f32 %v807
    %vm814 = vweird.f32 %v808
    %vm815 = vmor %vm813, %vm814
    %v816 = vsel %vm815, %v808, %v812
    %v817 = vand.u32 2147483647, %v807
    %vm818 = vcmp.eq.f32.partialorder %v817, 8.507059e+37
    %v819 = vand.u32 %v807, 2147483648
    %v820 = vor.u32 1.1754944e-38, %v819
    %v821 = vsel %vm818, %v820, %v816
    %v822 = vmul.f32 1.0, %v821
    %v823 = vtanh.pop %v803
    %v824 = vmul.f32 %v822, %v704
    %826 = vrot.lane.b32.xlu0 %v823, 64
    %v827 = vpop.permute.xlu0 %826
    %v829 = vmul.f32 %v822, %v827
    %831 = vrot.lane.b32.xlu0 %v829, 32
    %v832 = vpop.permute.xlu0 %831
    %v834 = vadd.f32 %v824, %v832
    %v835 = vtanh.pop %v834
    %837 = vrot.lane.b32.xlu0 %v835, 64
    %v838 = vpop.permute.xlu0 %837
    %v840 = vmul.f32 %v822, %v838
    %v841 = vadd.f32 %v149, %v799
    %v842 = vxor.u32 %v841, 2147483648
    %v843 = vmul.f32 %v842, 1.442695
    %v844 = vpow.pop %v843
    %v845 = vadd.f32 %v844, 1.0
    %v846 = vrcp.pop %v845
    %v847 = vmul.f32 %v845, %v846
    %v848 = vsub.f32 1.0, %v847
    %v849 = vmul.f32 %v846, %v848
    %v850 = vadd.f32 %v846, %v849
    %vm851 = vweird.f32 %v845
    %vm852 = vweird.f32 %v846
    %vm853 = vmor %vm851, %vm852
    %v854 = vsel %vm853, %v846, %v850
    %v855 = vand.u32 2147483647, %v845
    %vm856 = vcmp.eq.f32.partialorder %v855, 8.507059e+37
    %v857 = vand.u32 %v845, 2147483648
    %v858 = vor.u32 1.1754944e-38, %v857
    %v859 = vsel %vm856, %v858, %v854
    %v860 = vmul.f32 1.0, %v859
    %v861 = vtanh.pop %v841
    %v862 = vmul.f32 %v860, %v742
    %864 = vrot.lane.b32.xlu0 %v861, 64
    %v865 = vpop.permute.xlu0 %864
    %v867 = vmul.f32 %v860, %v865
    %869 = vrot.lane.b32.xlu0 %v867, 32
    %v870 = vpop.permute.xlu0 %869
    %v872 = vadd.f32 %v862, %v870
    %v873 = vtanh.pop %v872
    %875 = vrot.lane.b32.xlu0 %v873, 64
    %v876 = vpop.permute.xlu0 %875
    %v878 = vmul.f32 %v860, %v876
    %v879 = vpack.c.bf16 %v878, %v878
    %v880 = vpack.c.bf16 %v840, %v840
    %882 = vrot.lane.b32.xlu0 %v880, 32
    %v883 = vpop.permute.xlu0 %882
    %v885 = vsel %vm213, %v883, 0
    %887 = vmatpush.bf16.msra.mxu0 0
    %888 = vmatpush.bf16.msra.mxu0 0
    %889 = vmatpush.bf16.msra.mxu0 0
    %890 = vmatpush.bf16.msra.mxu0 0
    %891 = vmatpush.bf16.msra.mxu0 0
    %892 = vmatpush.bf16.msra.mxu0 0
    %893 = vmatpush.bf16.msra.mxu0 %v210
    %894 = vmatpush.bf16.msra.mxu0 %v209
    %895 = vmatmul.bf16.gmra.mxu0 %v885
    %v896 = vpop.f32.mrf.mxu0
    %v897 = vadd.f32 0.0, %v896
    %v898 = vpop.f32.mrf.mxu0
    %899 = vdwg.mxu0
    %901 = vrot.lane.b32.xlu0 %v879, 32
    %v902 = vpop.permute.xlu0 %901
    %v904 = vsel %vm213, %v902, 0
    %906 = vmatpush.bf16.msra.mxu0 0
    %907 = vmatpush.bf16.msra.mxu0 0
    %908 = vmatpush.bf16.msra.mxu0 0
    %909 = vmatpush.bf16.msra.mxu0 0
    %910 = vmatpush.bf16.msra.mxu0 0
    %911 = vmatpush.bf16.msra.mxu0 0
    %912 = vmatpush.bf16.msra.mxu0 %v247
    %913 = vmatpush.bf16.msra.mxu0 %v245
    %914 = vmatmul.bf16.gmra.mxu0 %v904
    %v915 = vpop.f32.mrf.mxu0
    %v916 = vadd.f32 0.0, %v915
    %v917 = vpop.f32.mrf.mxu0
    %918 = vdwg.mxu0
    %919 = vmatpush.bf16.msra.mxu0 0
    %920 = vmatpush.bf16.msra.mxu0 0
    %921 = vmatpush.bf16.msra.mxu0 0
    %922 = vmatpush.bf16.msra.mxu0 0
    %923 = vmatpush.bf16.msra.mxu0 0
    %924 = vmatpush.bf16.msra.mxu0 0
    %925 = vmatpush.bf16.msra.mxu0 %v248
    %926 = vmatpush.bf16.msra.mxu0 %v246
    %927 = vmatmul.bf16.gmra.mxu0 %v904
    %v928 = vpop.f32.mrf.mxu0
    %v929 = vadd.f32 0.0, %v928
    %v930 = vpop.f32.mrf.mxu0
    %931 = vdwg.mxu0
    %v932 = vadd.f32 %v916, %v897
    %v933 = vadd.f32 %v932, %v112
    %v934 = vxor.u32 %v933, 2147483648
    %v935 = vmul.f32 %v934, 1.442695
    %v936 = vpow.pop %v935
    %v937 = vadd.f32 %v936, 1.0
    %v938 = vrcp.pop %v937
    %v939 = vmul.f32 %v937, %v938
    %v940 = vsub.f32 1.0, %v939
    %v941 = vmul.f32 %v938, %v940
    %v942 = vadd.f32 %v938, %v941
    %vm943 = vweird.f32 %v937
    %vm944 = vweird.f32 %v938
    %vm945 = vmor %vm943, %vm944
    %v946 = vsel %vm945, %v938, %v942
    %v947 = vand.u32 2147483647, %v937
    %vm948 = vcmp.eq.f32.partialorder %v947, 8.507059e+37
    %v949 = vand.u32 %v937, 2147483648
    %v950 = vor.u32 1.1754944e-38, %v949
    %v951 = vsel %vm948, %v950, %v946
    %v952 = vmul.f32 1.0, %v951
    %v953 = vtanh.pop %v933
    %v954 = vmul.f32 %v952, %v834
    %956 = vrot.lane.b32.xlu0 %v953, 64
    %v957 = vpop.permute.xlu0 %956
    %v959 = vmul.f32 %v952, %v957
    %961 = vrot.lane.b32.xlu0 %v959, 32
    %v962 = vpop.permute.xlu0 %961
    %v964 = vadd.f32 %v954, %v962
    %v965 = vtanh.pop %v964
    %967 = vrot.lane.b32.xlu0 %v965, 64
    %v968 = vpop.permute.xlu0 %967
    %v970 = vmul.f32 %v952, %v968
    %v971 = vadd.f32 %v155, %v929
    %v972 = vxor.u32 %v971, 2147483648
    %v973 = vmul.f32 %v972, 1.442695
    %v974 = vpow.pop %v973
    %v975 = vadd.f32 %v974, 1.0
    %v976 = vrcp.pop %v975
    %v977 = vmul.f32 %v975, %v976
    %v978 = vsub.f32 1.0, %v977
    %v979 = vmul.f32 %v976, %v978
    %v980 = vadd.f32 %v976, %v979
    %vm981 = vweird.f32 %v975
    %vm982 = vweird.f32 %v976
    %vm983 = vmor %vm981, %vm982
    %v984 = vsel %vm983, %v976, %v980
    %v985 = vand.u32 2147483647, %v975
    %vm986 = vcmp.eq.f32.partialorder %v985, 8.507059e+37
    %v987 = vand.u32 %v975, 2147483648
    %v988 = vor.u32 1.1754944e-38, %v987
    %v989 = vsel %vm986, %v988, %v984
    %v990 = vmul.f32 1.0, %v989
    %v991 = vtanh.pop %v971
    %v992 = vmul.f32 %v990, %v872
    %994 = vrot.lane.b32.xlu0 %v991, 64
    %v995 = vpop.permute.xlu0 %994
    %v997 = vmul.f32 %v990, %v995
    %999 = vrot.lane.b32.xlu0 %v997, 32
    %v1000 = vpop.permute.xlu0 %999
    %v1002 = vadd.f32 %v992, %v1000
    %v1003 = vtanh.pop %v1002
    %1005 = vrot.lane.b32.xlu0 %v1003, 64
    %v1006 = vpop.permute.xlu0 %1005
    %v1008 = vmul.f32 %v990, %v1006
    %v1009 = vpack.c.bf16 %v1008, %v1008
    %v1010 = vpack.c.bf16 %v970, %v970
    %1012 = vrot.lane.b32.xlu0 %v1010, 32
    %v1013 = vpop.permute.xlu0 %1012
    %v1015 = vsel %vm213, %v1013, 0
    %1017 = vmatpush.bf16.msra.mxu0 0
    %1018 = vmatpush.bf16.msra.mxu0 0
    %1019 = vmatpush.bf16.msra.mxu0 0
    %1020 = vmatpush.bf16.msra.mxu0 0
    %1021 = vmatpush.bf16.msra.mxu0 0
    %1022 = vmatpush.bf16.msra.mxu0 0
    %1023 = vmatpush.bf16.msra.mxu0 %v210
    %1024 = vmatpush.bf16.msra.mxu0 %v209
    %1025 = vmatmul.bf16.gmra.mxu0 %v1015
    %v1026 = vpop.f32.mrf.mxu0
    %v1027 = vadd.f32 0.0, %v1026
    %v1028 = vpop.f32.mrf.mxu0
    %1029 = vdwg.mxu0
    %1031 = vrot.lane.b32.xlu0 %v1009, 32
    %v1032 = vpop.permute.xlu0 %1031
    %v1034 = vsel %vm213, %v1032, 0
    %1036 = vmatpush.bf16.msra.mxu0 0
    %1037 = vmatpush.bf16.msra.mxu0 0
    %1038 = vmatpush.bf16.msra.mxu0 0
    %1039 = vmatpush.bf16.msra.mxu0 0
    %1040 = vmatpush.bf16.msra.mxu0 0
    %1041 = vmatpush.bf16.msra.mxu0 0
    %1042 = vmatpush.bf16.msra.mxu0 %v247
    %1043 = vmatpush.bf16.msra.mxu0 %v245
    %1044 = vmatmul.bf16.gmra.mxu0 %v1034
    %v1045 = vpop.f32.mrf.mxu0
    %v1046 = vadd.f32 0.0, %v1045
    %v1047 = vpop.f32.mrf.mxu0
    %1048 = vdwg.mxu0
    %1049 = vmatpush.bf16.msra.mxu0 0
    %1050 = vmatpush.bf16.msra.mxu0 0
    %1051 = vmatpush.bf16.msra.mxu0 0
    %1052 = vmatpush.bf16.msra.mxu0 0
    %1053 = vmatpush.bf16.msra.mxu0 0
    %1054 = vmatpush.bf16.msra.mxu0 0
    %1055 = vmatpush.bf16.msra.mxu0 %v248
    %1056 = vmatpush.bf16.msra.mxu0 %v246
    %1057 = vmatmul.bf16.gmra.mxu0 %v1034
    %v1058 = vpop.f32.mrf.mxu0
    %v1059 = vadd.f32 0.0, %v1058
    %v1060 = vpop.f32.mrf.mxu0
    %1061 = vdwg.mxu0
    %v1062 = vadd.f32 %v1046, %v1027
    %v1063 = vadd.f32 %v1062, %v112
    %v1064 = vxor.u32 %v1063, 2147483648
    %v1065 = vmul.f32 %v1064, 1.442695
    %v1066 = vpow.pop %v1065
    %v1067 = vadd.f32 %v1066, 1.0
    %v1068 = vrcp.pop %v1067
    %v1069 = vmul.f32 %v1067, %v1068
    %v1070 = vsub.f32 1.0, %v1069
    %v1071 = vmul.f32 %v1068, %v1070
    %v1072 = vadd.f32 %v1068, %v1071
    %vm1073 = vweird.f32 %v1067
    %vm1074 = vweird.f32 %v1068
    %vm1075 = vmor %vm1073, %vm1074
    %v1076 = vsel %vm1075, %v1068, %v1072
    %v1077 = vand.u32 2147483647, %v1067
    %vm1078 = vcmp.eq.f32.partialorder %v1077, 8.507059e+37
    %v1079 = vand.u32 %v1067, 2147483648
    %v1080 = vor.u32 1.1754944e-38, %v1079
    %v1081 = vsel %vm1078, %v1080, %v1076
    %v1082 = vmul.f32 1.0, %v1081
    %v1083 = vtanh.pop %v1063
    %v1084 = vmul.f32 %v1082, %v964
    %1086 = vrot.lane.b32.xlu0 %v1083, 64
    %v1087 = vpop.permute.xlu0 %1086
    %v1089 = vmul.f32 %v1082, %v1087
    %1091 = vrot.lane.b32.xlu0 %v1089, 32
    %v1092 = vpop.permute.xlu0 %1091
    %v1094 = vadd.f32 %v1084, %v1092
    %v1095 = vtanh.pop %v1094
    %1097 = vrot.lane.b32.xlu0 %v1095, 64
    %v1098 = vpop.permute.xlu0 %1097
    %v1100 = vmul.f32 %v1082, %v1098
    %v1101 = vadd.f32 %v161, %v1059
    %v1102 = vxor.u32 %v1101, 2147483648
    %v1103 = vmul.f32 %v1102, 1.442695
    %v1104 = vpow.pop %v1103
    %v1105 = vadd.f32 %v1104, 1.0
    %v1106 = vrcp.pop %v1105
    %v1107 = vmul.f32 %v1105, %v1106
    %v1108 = vsub.f32 1.0, %v1107
    %v1109 = vmul.f32 %v1106, %v1108
    %v1110 = vadd.f32 %v1106, %v1109
    %vm1111 = vweird.f32 %v1105
    %vm1112 = vweird.f32 %v1106
    %vm1113 = vmor %vm1111, %vm1112
    %v1114 = vsel %vm1113, %v1106, %v1110
    %v1115 = vand.u32 2147483647, %v1105
    %vm1116 = vcmp.eq.f32.partialorder %v1115, 8.507059e+37
    %v1117 = vand.u32 %v1105, 2147483648
    %v1118 = vor.u32 1.1754944e-38, %v1117
    %v1119 = vsel %vm1116, %v1118, %v1114
    %v1120 = vmul.f32 1.0, %v1119
    %v1121 = vtanh.pop %v1101
    %v1122 = vmul.f32 %v1120, %v1002
    %1124 = vrot.lane.b32.xlu0 %v1121, 64
    %v1125 = vpop.permute.xlu0 %1124
    %v1127 = vmul.f32 %v1120, %v1125
    %1129 = vrot.lane.b32.xlu0 %v1127, 32
    %v1130 = vpop.permute.xlu0 %1129
    %v1132 = vadd.f32 %v1122, %v1130
    %v1133 = vtanh.pop %v1132
    %1135 = vrot.lane.b32.xlu0 %v1133, 64
    %v1136 = vpop.permute.xlu0 %1135
    %v1138 = vmul.f32 %v1120, %v1136
    %v1139 = vpack.c.bf16 %v1138, %v1138
    %v1140 = vpack.c.bf16 %v1100, %v1100
    %1142 = vrot.lane.b32.xlu0 %v1140, 32
    %v1143 = vpop.permute.xlu0 %1142
    %v1145 = vsel %vm213, %v1143, 0
    %1147 = vmatpush.bf16.msra.mxu0 0
    %1148 = vmatpush.bf16.msra.mxu0 0
    %1149 = vmatpush.bf16.msra.mxu0 0
    %1150 = vmatpush.bf16.msra.mxu0 0
    %1151 = vmatpush.bf16.msra.mxu0 0
    %1152 = vmatpush.bf16.msra.mxu0 0
    %1153 = vmatpush.bf16.msra.mxu0 %v210
    %1154 = vmatpush.bf16.msra.mxu0 %v209
    %1155 = vmatmul.bf16.gmra.mxu0 %v1145
    %v1156 = vpop.f32.mrf.mxu0
    %v1157 = vadd.f32 0.0, %v1156
    %v1158 = vpop.f32.mrf.mxu0
    %1159 = vdwg.mxu0
    %1161 = vrot.lane.b32.xlu0 %v1139, 32
    %v1162 = vpop.permute.xlu0 %1161
    %v1164 = vsel %vm213, %v1162, 0
    %1166 = vmatpush.bf16.msra.mxu0 0
    %1167 = vmatpush.bf16.msra.mxu0 0
    %1168 = vmatpush.bf16.msra.mxu0 0
    %1169 = vmatpush.bf16.msra.mxu0 0
    %1170 = vmatpush.bf16.msra.mxu0 0
    %1171 = vmatpush.bf16.msra.mxu0 0
    %1172 = vmatpush.bf16.msra.mxu0 %v247
    %1173 = vmatpush.bf16.msra.mxu0 %v245
    %1174 = vmatmul.bf16.gmra.mxu0 %v1164
    %v1175 = vpop.f32.mrf.mxu0
    %v1176 = vadd.f32 %v1157, %v1175
    %v1177 = vpop.f32.mrf.mxu0
    %1178 = vdwg.mxu0
    %v1179 = vadd.f32 %v1176, %v112
    %v1180 = vxor.u32 %v1179, 2147483648
    %v1181 = vmul.f32 %v1180, 1.442695
    %v1182 = vpow.pop %v1181
    %v1183 = vadd.f32 %v1182, 1.0
    %v1184 = vrcp.pop %v1183
    %v1185 = vmul.f32 %v1183, %v1184
    %v1186 = vsub.f32 1.0, %v1185
    %v1187 = vmul.f32 %v1184, %v1186
    %v1188 = vadd.f32 %v1184, %v1187
    %vm1189 = vweird.f32 %v1183
    %vm1190 = vweird.f32 %v1184
    %vm1191 = vmor %vm1189, %vm1190
    %v1192 = vsel %vm1191, %v1184, %v1188
    %v1193 = vand.u32 2147483647, %v1183
    %vm1194 = vcmp.eq.f32.partialorder %v1193, 8.507059e+37
    %v1195 = vand.u32 %v1183, 2147483648
    %v1196 = vor.u32 1.1754944e-38, %v1195
    %v1197 = vsel %vm1194, %v1196, %v1192
    %v1198 = vmul.f32 1.0, %v1197
    %v1199 = vtanh.pop %v1179
    %v1200 = vmul.f32 %v1198, %v1094
    %1202 = vrot.lane.b32.xlu0 %v1199, 64
    %v1203 = vpop.permute.xlu0 %1202
    %v1205 = vmul.f32 %v1198, %v1203
    %1207 = vrot.lane.b32.xlu0 %v1205, 32
    %v1208 = vpop.permute.xlu0 %1207
    %v1210 = vadd.f32 %v1200, %v1208
    %v1211 = vtanh.pop %v1210
    %1213 = vrot.lane.b32.xlu0 %v1211, 64
    %v1214 = vpop.permute.xlu0 %1213
    %v1216 = vmul.f32 %v1198, %v1214
    %v1217 = vpack.c.bf16 %v1216, %v1216
    %v1218 = vperm.slane %v109, 3
    %1220 = vrot.lane.b32.xlu0 %v1217, 32
    %v1221 = vpop.permute.xlu0 %1220
    %v1226 = vunpack.c.l.b16 %v105
    %v1227 = vunpack.c.l.b16 %v106
    %v1228 = vunpack.c.l.b16 %v107
    %v1229 = vunpack.c.l.b16 %v108
    %v1230 = vpack.c.b16 %v1227, %v1226
    %v1231 = vpack.c.b16 %v1229, %v1228
    %v1235 = vsel %vm213, %v1221, 0
    %1237 = vmatpush.bf16.msra.mxu0 0
    %1238 = vmatpush.bf16.msra.mxu0 0
    %1239 = vmatpush.bf16.msra.mxu0 0
    %1240 = vmatpush.bf16.msra.mxu0 0
    %1241 = vmatpush.bf16.msra.mxu0 0
    %1242 = vmatpush.bf16.msra.mxu0 0
    %1243 = vmatpush.bf16.msra.mxu0 %v1231
    %1244 = vmatpush.bf16.msra.mxu0 %v1230
    %1245 = vmatmul.bf16.gmra.mxu0 %v1235
    %v1246 = vpop.f32.mrf.mxu0
    %v1247 = vadd.f32 %v1218, %v1246
    %v1248 = vpop.f32.mrf.mxu0
    %1249 = vdwg.mxu0
    %1250 = vst [vmem:[#allocation11] sm:$0xff] %v1247
    // Predicated region
    $region42: #{tpu_custom_call.1} parent=1 // pred_check
      _
    $region43: #{tpu_custom_call.1} parent=1 // pred_check_branch
      %1252 = sbr.rel (0) target = $region45
    $region44: #{tpu_custom_call.1} parent=1 // pred_region
      %1254 = vsyncadd [#allocation4], 0
      %s1256 = sshll.u32 [#allocation11], 4
      %s1257 = int_to_ptr.vmem [resolvable:$true] %s1256
      %s1258 = sshll.u32 %s5, 4
      %s1259 = int_to_ptr.hbm [resolvable:$true] %s1258
      %1261 = dma.vmem_to_hbm [thread:$0]  %s1257, 128, %s1259, [#allocation4]
    $region45: #{tpu_custom_call.1} parent=1 // pred_fallthru
      _
    // Predicated region
    $region46: #{tpu_custom_call.1} parent=1 // pred_check
      _
    $region47: #{tpu_custom_call.1} parent=1 // pred_check_branch
      %1263 = sbr.rel (0) target = $region49
    $region48: #{tpu_custom_call.1} parent=1 // pred_region
      %1265 = dma.done [#allocation4], 128
    $region49: #{tpu_custom_call.1} parent=1 // pred_fallthru
      _
    %1266 = vsyncpa [#allocation3], 1
    %1267 = vsyncpa [#allocation6], 1
    %1268 = vsyncpa [#allocation9], 1
    %1269 = vsyncpa [#allocation4], 1

</llo_original>
